<compile_context>
chip_gen: v5e
topology: v5e:2x2
jax: 0.10.0
libtpu: 0.0.40
codegen_flags: <defaults>
</compile_context>

<pallas_src>
import functools

import jax
import jax.numpy as jnp
import numpy as np
from jax.experimental import pallas as pl
from jax.experimental.pallas import tpu as pltpu


def _round_up(x, m):
    return ((x + m - 1) // m) * m


# ---------------------------------------------------------------------------
# Fused kernel: stacked tanh-RNN recurrence (time-major, T_BLK steps / block)
#               + MLP head (Linear -> ReLU -> Linear) on the block's rows.
# ---------------------------------------------------------------------------
def _make_fused_kernel(num_layers, t_blk):
    def kernel(*refs):
        # refs: x, [w_ih, w_hh, b] * num_layers, w1, b1, w2, b2,
        #       out_ref, h_state (scratch), y_rows (scratch)
        x_ref = refs[0]
        idx = 1
        layer_refs = []
        for _ in range(num_layers):
            layer_refs.append(refs[idx:idx + 3])
            idx += 3
        w1_ref, b1_ref, w2_ref, b2_ref = refs[idx:idx + 4]
        idx += 4
        out_ref = refs[idx]
        h_ref = refs[idx + 1]      # (num_layers, N_blk, H_pad) f32, persists
        y_ref = refs[idx + 2]      # (T_blk, N_blk, H_pad) bf16, per-block rows

        tb = pl.program_id(1)      # time-block index (sequential, "arbitrary")

        @pl.when(tb == 0)
        def _():
            # PyTorch default h0 = zeros (re-init at the start of each batch block).
            h_ref[...] = jnp.zeros(h_ref.shape, h_ref.dtype)

        # Hoist weight/bias loads out of the unrolled time loop.
        weights = [(w_ih[...], w_hh[...], b[...]) for (w_ih, w_hh, b) in layer_refs]
        mxu = weights[0][0].dtype          # bf16 operands, f32 accumulation
        t, n, d = x_ref.shape
        h_pad = h_ref.shape[-1]
        out_pad = out_ref.shape[-1]

        # Layer-0 input projection for ALL timesteps of this block: one big GEMM.
        w_ih0, w_hh0, b0 = weights[0]
        x_all = x_ref[...].astype(mxu).reshape(t * n, d)
        x_proj = (jnp.dot(x_all, w_ih0, preferred_element_type=jnp.float32)
                  + b0).reshape(t, n, h_pad)

        # Carry hidden states in values across the T_BLK timesteps of this block.
        hs = [h_ref[l] for l in range(num_layers)]

        for tt in range(t_blk):    # static unroll over the time block
            pre = x_proj[tt] + jnp.dot(hs[0].astype(mxu), w_hh0,
                                       preferred_element_type=jnp.float32)
            hs[0] = jnp.tanh(pre)
            inp = hs[0].astype(mxu)
            for l in range(1, num_layers):
                w_ih, w_hh, b = weights[l]
                pre = ((jnp.dot(inp, w_ih, preferred_element_type=jnp.float32) + b)
                       + jnp.dot(hs[l].astype(mxu), w_hh,
                                 preferred_element_type=jnp.float32))
                hs[l] = jnp.tanh(pre)
                inp = hs[l].astype(mxu)
                # TODO(synk): inter-layer dropout (p>0, training mode) not applied
                # (module default dropout=0.0 / eval semantics).
            y_ref[tt] = hs[num_layers - 1].astype(y_ref.dtype)  # lane-dense store

        # Persist hidden state for the next time block.
        for l in range(num_layers):
            h_ref[l] = hs[l]

        # Head: one batched GEMM over all T_BLK*N_BLK rows of this block.
        h_rows = y_ref[...].reshape(t_blk * n, h_pad)
        hid = jnp.maximum(
            jnp.dot(h_rows, w1_ref[...], preferred_element_type=jnp.float32)
            + b1_ref[...], 0.0)
        out = (jnp.dot(hid.astype(mxu), w2_ref[...],
                       preferred_element_type=jnp.float32) + b2_ref[...])
        out_ref[...] = out.reshape(t_blk, n, out_pad).astype(out_ref.dtype)

    return kernel


def init_params(key, input_size, hidden_size, num_layers, out_size):
    """Deterministic init mirroring torch.nn.RNN / Linear shapes.

    Weights are stored pre-transposed so the kernel computes x @ W directly.
    """
    params = {"rnn": [], "mlp": {}}
    k = 1.0 / np.sqrt(hidden_size)
    for l in range(num_layers):
        in_dim = input_size if l == 0 else hidden_size
        key, k1, k2, k3, k4 = jax.random.split(key, 5)
        params["rnn"].append({
            "w_ih": jax.random.uniform(k1, (in_dim, hidden_size), jnp.float32, -k, k),
            "w_hh": jax.random.uniform(k2, (hidden_size, hidden_size), jnp.float32, -k, k),
            "b_ih": jax.random.uniform(k3, (1, hidden_size), jnp.float32, -k, k),
            "b_hh": jax.random.uniform(k4, (1, hidden_size), jnp.float32, -k, k),
        })
    key, k1, k2, k3, k4 = jax.random.split(key, 5)
    params["mlp"] = {
        "w1": jax.random.uniform(k1, (hidden_size, hidden_size), jnp.float32, -k, k),
        "b1": jax.random.uniform(k2, (1, hidden_size), jnp.float32, -k, k),
        "w2": jax.random.uniform(k3, (hidden_size, out_size), jnp.float32, -k, k),
        "b2": jax.random.uniform(k4, (1, out_size), jnp.float32, -k, k),
    }
    return params


@functools.partial(jax.jit, static_argnames=("out_size", "weight_dtype"))
def rnn_model_forward(x, params, out_size=1, weight_dtype=jnp.bfloat16):
    """x: (N, L, input_size) batch_first -> (N, L, out_size)."""
    N, L, D_in = x.shape
    num_layers = len(params["rnn"])
    H = params["rnn"][0]["w_hh"].shape[0]
    f32 = jnp.float32

    # --- padding / tiling choices -------------------------------------------
    H_pad = _round_up(H, 128)               # lane dim of all hidden tensors
    N_blk = min(_round_up(N, 8), 128)       # batch block (sublane multiple)
    N_pad = _round_up(N, N_blk)
    T_blk = min(L, 16)                      # timesteps per grid step
    L_pad = _round_up(L, T_blk)
    OUT_pad = _round_up(out_size, 128)      # lane-dense head output

    # --- pack / pad / cast parameters (zero-padding is exact: padded lanes
    #     stay identically zero through tanh/relu) ----------------------------
    rnn_inputs = []
    for l, lp in enumerate(params["rnn"]):
        in_dim = lp["w_ih"].shape[0]
        in_pad = in_dim if l == 0 else H_pad  # layer 0 consumes raw input_size
        w_ih = jnp.pad(lp["w_ih"], ((0, in_pad - in_dim), (0, H_pad - H)))
        w_hh = jnp.pad(lp["w_hh"], ((0, H_pad - H), (0, H_pad - H)))
        b = jnp.pad(lp["b_ih"] + lp["b_hh"], ((0, 0), (0, H_pad - H)))  # pre-summed
        rnn_inputs += [w_ih.astype(weight_dtype), w_hh.astype(weight_dtype),
                       b.astype(f32)]

    w1 = jnp.pad(params["mlp"]["w1"],
                 ((0, H_pad - H), (0, H_pad - H))).astype(weight_dtype)
    b1 = jnp.pad(params["mlp"]["b1"], ((0, 0), (0, H_pad - H))).astype(f32)
    w2 = jnp.pad(params["mlp"]["w2"],
                 ((0, H_pad - H), (0, OUT_pad - out_size))).astype(weight_dtype)
    b2 = jnp.pad(params["mlp"]["b2"], ((0, 0), (0, OUT_pad - out_size))).astype(f32)
    head_inputs = [w1, b1, w2, b2]

    # --- time-major, padded input --------------------------------------------
    x_tm = jnp.transpose(x, (1, 0, 2)).astype(f32)            # (L, N, D_in)
    x_tm = jnp.pad(x_tm, ((0, L_pad - L), (0, N_pad - N), (0, 0)))

    def _const_spec(a):
        nd = a.ndim
        return pl.BlockSpec(a.shape, lambda b, t, _nd=nd: (0,) * _nd)
    # NOTE: weight index_maps are constant across the grid, so the resident
    # VMEM copies are reused across all grid steps.

    in_specs = [pl.BlockSpec((T_blk, N_blk, D_in), lambda b, t: (t, b, 0))]
    in_specs += [_const_spec(a) for a in rnn_inputs + head_inputs]

    out_3d = pl.pallas_call(
        _make_fused_kernel(num_layers, T_blk),
        out_shape=jax.ShapeDtypeStruct((L_pad, N_pad, OUT_pad), f32),
        grid_spec=pltpu.PrefetchScalarGridSpec(
            num_scalar_prefetch=0,
            grid=(N_pad // N_blk, L_pad // T_blk),
            in_specs=in_specs,
            out_specs=pl.BlockSpec((T_blk, N_blk, OUT_pad), lambda b, t: (t, b, 0)),
            scratch_shapes=[
                pltpu.VMEM((num_layers, N_blk, H_pad), f32),       # carried h
                pltpu.VMEM((T_blk, N_blk, H_pad), weight_dtype),   # block rows
            ],
        ),
        compiler_params=pltpu.CompilerParams(
            # batch blocks independent (megacore); time is sequential.
            dimension_semantics=("parallel", "arbitrary")),
    )(x_tm, *rnn_inputs, *head_inputs)

    # (L, N, out_size) -> (N, L, out_size); slice/transpose is narrow (out_size).
    out = jnp.transpose(out_3d[:L, :N, :out_size], (1, 0, 2))
    return out.astype(x.dtype)


def rnn_model_reference(x, params, out_size=1, weight_dtype=jnp.float32):
    """Pure-JAX reference.  weight_dtype=bfloat16 mirrors the kernel's
    mixed-precision recipe; float32 matches the f32 PyTorch module."""
    N, L, D_in = x.shape
    num_layers = len(params["rnn"])
    H = params["rnn"][0]["w_hh"].shape[0]
    f32 = jnp.float32

    rnn_w = [(lp["w_ih"].astype(weight_dtype),
              lp["w_hh"].astype(weight_dtype),
              (lp["b_ih"] + lp["b_hh"]).astype(f32)) for lp in params["rnn"]]
    w1 = params["mlp"]["w1"].astype(weight_dtype)
    b1 = params["mlp"]["b1"].astype(f32)
    w2 = params["mlp"]["w2"].astype(weight_dtype)
    b2 = params["mlp"]["b2"].astype(f32)

    h = [jnp.zeros((N, H), f32) for _ in range(num_layers)]
    hiddens = []
    for t in range(L):
        inp = x[:, t, :].astype(weight_dtype)
        for l, (w_ih, w_hh, b) in enumerate(rnn_w):
            pre = ((jnp.dot(inp, w_ih, preferred_element_type=f32) + b)
                   + jnp.dot(h[l].astype(weight_dtype), w_hh,
                             preferred_element_type=f32))
            h[l] = jnp.tanh(pre)
            inp = h[l].astype(weight_dtype)
        hiddens.append(h[num_layers - 1])
    hs = jnp.stack(hiddens, axis=1).reshape(N * L, H)
    hid = jnp.maximum(
        jnp.dot(hs.astype(weight_dtype), w1, preferred_element_type=f32) + b1, 0.0)
    out = jnp.dot(hid.astype(weight_dtype), w2, preferred_element_type=f32) + b2
    return out.reshape(N, L, out_size).astype(x.dtype)


if __name__ == "__main__":
    # Small shapes consistent with forward(): x is (N, L, input_size)
    N, L = 2, 8
    input_size, hidden_size, num_layers, out_size = 16, 32, 2, 1

    key = jax.random.PRNGKey(0)
    key, kx, kp = jax.random.split(key, 3)
    x = jax.random.normal(kx, (N, L, input_size), jnp.float32)
    params = init_params(kp, input_size, hidden_size, num_layers, out_size)

    out = rnn_model_forward(x, params, out_size=out_size)
    out = jax.block_until_ready(out)
    assert out.shape == (N, L, out_size), out.shape

    # Tight check against a reference mirroring the kernel's bf16-weight recipe.
    ref_bf16 = rnn_model_reference(x, params, out_size=out_size,
                                   weight_dtype=jnp.bfloat16)
    np.testing.assert_allclose(np.asarray(out), np.asarray(ref_bf16),
                               rtol=2e-3, atol=2e-3)
    # Loose check against the pure-f32 (PyTorch-semantics) reference.
    ref_f32 = rnn_model_reference(x, params, out_size=out_size,
                                  weight_dtype=jnp.float32)
    np.testing.assert_allclose(np.asarray(out), np.asarray(ref_f32),
                               rtol=5e-2, atol=5e-2)

    print("KERNEL_OK")
</pallas_src>

<mosaic_0001>
module attributes {stable_mosaic.version = 11 : i64} {
  func.func @kernel(%arg0: i32, %arg1: i32, %arg2: memref<8x8x16xf32, #tpu.memory_space<vmem>>, %arg3: memref<16x128xbf16, #tpu.memory_space<vmem>>, %arg4: memref<128x128xbf16, #tpu.memory_space<vmem>>, %arg5: memref<1x128xf32, #tpu.memory_space<vmem>>, %arg6: memref<128x128xbf16, #tpu.memory_space<vmem>>, %arg7: memref<128x128xbf16, #tpu.memory_space<vmem>>, %arg8: memref<1x128xf32, #tpu.memory_space<vmem>>, %arg9: memref<128x128xbf16, #tpu.memory_space<vmem>>, %arg10: memref<1x128xf32, #tpu.memory_space<vmem>>, %arg11: memref<128x128xbf16, #tpu.memory_space<vmem>>, %arg12: memref<1x128xf32, #tpu.memory_space<vmem>>, %arg13: memref<8x8x128xf32, #tpu.memory_space<vmem>>, %arg14: memref<2x8x128xf32, #tpu.memory_space<vmem>>, %arg15: memref<8x8x128xbf16, #tpu.memory_space<vmem>>) attributes {dimension_semantics = [#tpu.dimension_semantics<parallel>, #tpu.dimension_semantics<arbitrary>], iteration_bounds = array<i64: 1, 1>, scalar_prefetch = 0 : i64, scratch_operands = 2 : i64, tpu.core_type = #tpu.core_type<tc>, window_params = [{transform_indices = @transform_0, window_bounds = array<i64: 8, 8, 16>}, {pipeline_mode = #tpu.pipeline_mode<synchronous>, transform_indices = @transform_1, window_bounds = array<i64: 16, 128>}, {pipeline_mode = #tpu.pipeline_mode<synchronous>, transform_indices = @transform_2, window_bounds = array<i64: 128, 128>}, {pipeline_mode = #tpu.pipeline_mode<synchronous>, transform_indices = @transform_3, window_bounds = array<i64: 1, 128>}, {pipeline_mode = #tpu.pipeline_mode<synchronous>, transform_indices = @transform_4, window_bounds = array<i64: 128, 128>}, {pipeline_mode = #tpu.pipeline_mode<synchronous>, transform_indices = @transform_5, window_bounds = array<i64: 128, 128>}, {pipeline_mode = #tpu.pipeline_mode<synchronous>, transform_indices = @transform_6, window_bounds = array<i64: 1, 128>}, {pipeline_mode = #tpu.pipeline_mode<synchronous>, transform_indices = @transform_7, window_bounds = array<i64: 128, 128>}, {pipeline_mode = #tpu.pipeline_mode<synchronous>, transform_indices = @transform_8, window_bounds = array<i64: 1, 128>}, {pipeline_mode = #tpu.pipeline_mode<synchronous>, transform_indices = @transform_9, window_bounds = array<i64: 128, 128>}, {pipeline_mode = #tpu.pipeline_mode<synchronous>, transform_indices = @transform_10, window_bounds = array<i64: 1, 128>}, {transform_indices = @transform_11, window_bounds = array<i64: 8, 8, 128>}]} {
    %c0_i32 = arith.constant 0 : i32
    %0 = arith.cmpi eq, %arg1, %c0_i32 : i32
    %1 = arith.extui %0 : i1 to i32
    %c0_i32_0 = arith.constant 0 : i32
    %2 = arith.cmpi ne, %1, %c0_i32_0 : i32
    scf.if %2 {
      %cst_85 = arith.constant 0.000000e+00 : f32
      %187 = vector.broadcast %cst_85 : f32 to vector<2x8x128xf32>
      %c0_86 = arith.constant 0 : index
      %c0_87 = arith.constant 0 : index
      %c0_88 = arith.constant 0 : index
      %188 = vector.load %arg14[%c0_86, %c0_87, %c0_88] : memref<2x8x128xf32, #tpu.memory_space<vmem>>, vector<2x8x128xf32>
      tpu.vector_store %arg14[%c0_86, %c0_87, %c0_88], %187 {strides = array<i32>} : memref<2x8x128xf32, #tpu.memory_space<vmem>>, vector<2x8x128xf32>,
    } else {
    }
    %c0 = arith.constant 0 : index
    %c0_1 = arith.constant 0 : index
    %3 = vector.load %arg3[%c0, %c0_1] : memref<16x128xbf16, #tpu.memory_space<vmem>>, vector<16x128xbf16>
    %c0_2 = arith.constant 0 : index
    %c0_3 = arith.constant 0 : index
    %4 = vector.load %arg4[%c0_2, %c0_3] : memref<128x128xbf16, #tpu.memory_space<vmem>>, vector<128x128xbf16>
    %c0_4 = arith.constant 0 : index
    %c0_5 = arith.constant 0 : index
    %5 = vector.load %arg5[%c0_4, %c0_5] : memref<1x128xf32, #tpu.memory_space<vmem>>, vector<1x128xf32>
    %c0_6 = arith.constant 0 : index
    %c0_7 = arith.constant 0 : index
    %6 = vector.load %arg6[%c0_6, %c0_7] : memref<128x128xbf16, #tpu.memory_space<vmem>>, vector<128x128xbf16>
    %c0_8 = arith.constant 0 : index
    %c0_9 = arith.constant 0 : index
    %7 = vector.load %arg7[%c0_8, %c0_9] : memref<128x128xbf16, #tpu.memory_space<vmem>>, vector<128x128xbf16>
    %c0_10 = arith.constant 0 : index
    %c0_11 = arith.constant 0 : index
    %8 = vector.load %arg8[%c0_10, %c0_11] : memref<1x128xf32, #tpu.memory_space<vmem>>, vector<1x128xf32>
    %c0_12 = arith.constant 0 : index
    %c0_13 = arith.constant 0 : index
    %c0_14 = arith.constant 0 : index
    %9 = vector.load %arg2[%c0_12, %c0_13, %c0_14] : memref<8x8x16xf32, #tpu.memory_space<vmem>>, vector<8x8x16xf32>
    %10 = arith.truncf %9 : vector<8x8x16xf32> to vector<8x8x16xbf16>
    %11 = vector.shape_cast %10 : vector<8x8x16xbf16> to vector<64x16xbf16>
    %cst = arith.constant dense<0.000000e+00> : vector<64x128xf32>
    %12 = tpu.matmul %11, %3, %cst {dimension_numbers = #tpu.dot_dimension_numbers<[1], [0], [0], [1], [0, 0, 1, 1], [], []>} : vector<64x16xbf16>, vector<16x128xbf16>, vector<64x128xf32> -> vector<64x128xf32>
    %13 = vector.broadcast %5 : vector<1x128xf32> to vector<64x128xf32>
    %14 = arith.addf %12, %13 : vector<64x128xf32>
    %15 = vector.shape_cast %14 : vector<64x128xf32> to vector<8x8x128xf32>
    %c0_15 = arith.constant 0 : index
    %c0_16 = arith.constant 0 : index
    %c0_17 = arith.constant 0 : index
    %16 = vector.load %arg14[%c0_15, %c0_16, %c0_17] : memref<2x8x128xf32, #tpu.memory_space<vmem>>, vector<1x8x128xf32>
    %17 = vector.shape_cast %16 : vector<1x8x128xf32> to vector<8x128xf32>
    %c1 = arith.constant 1 : index
    %c0_18 = arith.constant 0 : index
    %c0_19 = arith.constant 0 : index
    %18 = vector.load %arg14[%c1, %c0_18, %c0_19] : memref<2x8x128xf32, #tpu.memory_space<vmem>>, vector<1x8x128xf32>
    %19 = vector.shape_cast %18 : vector<1x8x128xf32> to vector<8x128xf32>
    %20 = vector.extract_strided_slice %15 {offsets = [0, 0, 0], sizes = [1, 8, 128], strides = [1, 1, 1]} : vector<8x8x128xf32> to vector<1x8x128xf32>
    %21 = vector.shape_cast %20 : vector<1x8x128xf32> to vector<8x128xf32>
    %22 = arith.truncf %17 : vector<8x128xf32> to vector<8x128xbf16>
    %cst_20 = arith.constant dense<0.000000e+00> : vector<8x128xf32>
    %23 = tpu.matmul %22, %4, %cst_20 {dimension_numbers = #tpu.dot_dimension_numbers<[1], [0], [0], [1], [0, 0, 1, 1], [], []>} : vector<8x128xbf16>, vector<128x128xbf16>, vector<8x128xf32> -> vector<8x128xf32>
    %24 = arith.addf %21, %23 : vector<8x128xf32>
    %25 = math.tanh %24 : vector<8x128xf32>
    %26 = arith.truncf %25 : vector<8x128xf32> to vector<8x128xbf16>
    %cst_21 = arith.constant dense<0.000000e+00> : vector<8x128xf32>
    %27 = tpu.matmul %26, %6, %cst_21 {dimension_numbers = #tpu.dot_dimension_numbers<[1], [0], [0], [1], [0, 0, 1, 1], [], []>} : vector<8x128xbf16>, vector<128x128xbf16>, vector<8x128xf32> -> vector<8x128xf32>
    %28 = vector.broadcast %8 : vector<1x128xf32> to vector<8x128xf32>
    %29 = arith.addf %27, %28 : vector<8x128xf32>
    %30 = arith.truncf %19 : vector<8x128xf32> to vector<8x128xbf16>
    %cst_22 = arith.constant dense<0.000000e+00> : vector<8x128xf32>
    %31 = tpu.matmul %30, %7, %cst_22 {dimension_numbers = #tpu.dot_dimension_numbers<[1], [0], [0], [1], [0, 0, 1, 1], [], []>} : vector<8x128xbf16>, vector<128x128xbf16>, vector<8x128xf32> -> vector<8x128xf32>
    %32 = arith.addf %29, %31 : vector<8x128xf32>
    %33 = math.tanh %32 : vector<8x128xf32>
    %34 = arith.truncf %33 : vector<8x128xf32> to vector<8x128xbf16>
    %c0_23 = arith.constant 0 : index
    %c0_24 = arith.constant 0 : index
    %c0_25 = arith.constant 0 : index
    %35 = vector.load %arg15[%c0_23, %c0_24, %c0_25] : memref<8x8x128xbf16, #tpu.memory_space<vmem>>, vector<1x8x128xbf16>
    %36 = vector.shape_cast %35 : vector<1x8x128xbf16> to vector<8x128xbf16>
    %37 = vector.shape_cast %34 : vector<8x128xbf16> to vector<1x8x128xbf16>
    tpu.vector_store %arg15[%c0_23, %c0_24, %c0_25], %37 {strides = array<i32>} : memref<8x8x128xbf16, #tpu.memory_space<vmem>>, vector<1x8x128xbf16>,
    %38 = vector.extract_strided_slice %15 {offsets = [1, 0, 0], sizes = [1, 8, 128], strides = [1, 1, 1]} : vector<8x8x128xf32> to vector<1x8x128xf32>
    %39 = vector.shape_cast %38 : vector<1x8x128xf32> to vector<8x128xf32>
    %40 = arith.truncf %25 : vector<8x128xf32> to vector<8x128xbf16>
    %cst_26 = arith.constant dense<0.000000e+00> : vector<8x128xf32>
    %41 = tpu.matmul %40, %4, %cst_26 {dimension_numbers = #tpu.dot_dimension_numbers<[1], [0], [0], [1], [0, 0, 1, 1], [], []>} : vector<8x128xbf16>, vector<128x128xbf16>, vector<8x128xf32> -> vector<8x128xf32>
    %42 = arith.addf %39, %41 : vector<8x128xf32>
    %43 = math.tanh %42 : vector<8x128xf32>
    %44 = arith.truncf %43 : vector<8x128xf32> to vector<8x128xbf16>
    %cst_27 = arith.constant dense<0.000000e+00> : vector<8x128xf32>
    %45 = tpu.matmul %44, %6, %cst_27 {dimension_numbers = #tpu.dot_dimension_numbers<[1], [0], [0], [1], [0, 0, 1, 1], [], []>} : vector<8x128xbf16>, vector<128x128xbf16>, vector<8x128xf32> -> vector<8x128xf32>
    %46 = vector.broadcast %8 : vector<1x128xf32> to vector<8x128xf32>
    %47 = arith.addf %45, %46 : vector<8x128xf32>
    %48 = arith.truncf %33 : vector<8x128xf32> to vector<8x128xbf16>
    %cst_28 = arith.constant dense<0.000000e+00> : vector<8x128xf32>
    %49 = tpu.matmul %48, %7, %cst_28 {dimension_numbers = #tpu.dot_dimension_numbers<[1], [0], [0], [1], [0, 0, 1, 1], [], []>} : vector<8x128xbf16>, vector<128x128xbf16>, vector<8x128xf32> -> vector<8x128xf32>
    %50 = arith.addf %47, %49 : vector<8x128xf32>
    %51 = math.tanh %50 : vector<8x128xf32>
    %52 = arith.truncf %51 : vector<8x128xf32> to vector<8x128xbf16>
    %c1_29 = arith.constant 1 : index
    %c0_30 = arith.constant 0 : index
    %c0_31 = arith.constant 0 : index
    %53 = vector.load %arg15[%c1_29, %c0_30, %c0_31] : memref<8x8x128xbf16, #tpu.memory_space<vmem>>, vector<1x8x128xbf16>
    %54 = vector.shape_cast %53 : vector<1x8x128xbf16> to vector<8x128xbf16>
    %55 = vector.shape_cast %52 : vector<8x128xbf16> to vector<1x8x128xbf16>
    tpu.vector_store %arg15[%c1_29, %c0_30, %c0_31], %55 {strides = array<i32>} : memref<8x8x128xbf16, #tpu.memory_space<vmem>>, vector<1x8x128xbf16>,
    %56 = vector.extract_strided_slice %15 {offsets = [2, 0, 0], sizes = [1, 8, 128], strides = [1, 1, 1]} : vector<8x8x128xf32> to vector<1x8x128xf32>
    %57 = vector.shape_cast %56 : vector<1x8x128xf32> to vector<8x128xf32>
    %58 = arith.truncf %43 : vector<8x128xf32> to vector<8x128xbf16>
    %cst_32 = arith.constant dense<0.000000e+00> : vector<8x128xf32>
    %59 = tpu.matmul %58, %4, %cst_32 {dimension_numbers = #tpu.dot_dimension_numbers<[1], [0], [0], [1], [0, 0, 1, 1], [], []>} : vector<8x128xbf16>, vector<128x128xbf16>, vector<8x128xf32> -> vector<8x128xf32>
    %60 = arith.addf %57, %59 : vector<8x128xf32>
    %61 = math.tanh %60 : vector<8x128xf32>
    %62 = arith.truncf %61 : vector<8x128xf32> to vector<8x128xbf16>
    %cst_33 = arith.constant dense<0.000000e+00> : vector<8x128xf32>
    %63 = tpu.matmul %62, %6, %cst_33 {dimension_numbers = #tpu.dot_dimension_numbers<[1], [0], [0], [1], [0, 0, 1, 1], [], []>} : vector<8x128xbf16>, vector<128x128xbf16>, vector<8x128xf32> -> vector<8x128xf32>
    %64 = vector.broadcast %8 : vector<1x128xf32> to vector<8x128xf32>
    %65 = arith.addf %63, %64 : vector<8x128xf32>
    %66 = arith.truncf %51 : vector<8x128xf32> to vector<8x128xbf16>
    %cst_34 = arith.constant dense<0.000000e+00> : vector<8x128xf32>
    %67 = tpu.matmul %66, %7, %cst_34 {dimension_numbers = #tpu.dot_dimension_numbers<[1], [0], [0], [1], [0, 0, 1, 1], [], []>} : vector<8x128xbf16>, vector<128x128xbf16>, vector<8x128xf32> -> vector<8x128xf32>
    %68 = arith.addf %65, %67 : vector<8x128xf32>
    %69 = math.tanh %68 : vector<8x128xf32>
    %70 = arith.truncf %69 : vector<8x128xf32> to vector<8x128xbf16>
    %c2 = arith.constant 2 : index
    %c0_35 = arith.constant 0 : index
    %c0_36 = arith.constant 0 : index
    %71 = vector.load %arg15[%c2, %c0_35, %c0_36] : memref<8x8x128xbf16, #tpu.memory_space<vmem>>, vector<1x8x128xbf16>
    %72 = vector.shape_cast %71 : vector<1x8x128xbf16> to vector<8x128xbf16>
    %73 = vector.shape_cast %70 : vector<8x128xbf16> to vector<1x8x128xbf16>
    tpu.vector_store %arg15[%c2, %c0_35, %c0_36], %73 {strides = array<i32>} : memref<8x8x128xbf16, #tpu.memory_space<vmem>>, vector<1x8x128xbf16>,
    %74 = vector.extract_strided_slice %15 {offsets = [3, 0, 0], sizes = [1, 8, 128], strides = [1, 1, 1]} : vector<8x8x128xf32> to vector<1x8x128xf32>
    %75 = vector.shape_cast %74 : vector<1x8x128xf32> to vector<8x128xf32>
    %76 = arith.truncf %61 : vector<8x128xf32> to vector<8x128xbf16>
    %cst_37 = arith.constant dense<0.000000e+00> : vector<8x128xf32>
    %77 = tpu.matmul %76, %4, %cst_37 {dimension_numbers = #tpu.dot_dimension_numbers<[1], [0], [0], [1], [0, 0, 1, 1], [], []>} : vector<8x128xbf16>, vector<128x128xbf16>, vector<8x128xf32> -> vector<8x128xf32>
    %78 = arith.addf %75, %77 : vector<8x128xf32>
    %79 = math.tanh %78 : vector<8x128xf32>
    %80 = arith.truncf %79 : vector<8x128xf32> to vector<8x128xbf16>
    %cst_38 = arith.constant dense<0.000000e+00> : vector<8x128xf32>
    %81 = tpu.matmul %80, %6, %cst_38 {dimension_numbers = #tpu.dot_dimension_numbers<[1], [0], [0], [1], [0, 0, 1, 1], [], []>} : vector<8x128xbf16>, vector<128x128xbf16>, vector<8x128xf32> -> vector<8x128xf32>
    %82 = vector.broadcast %8 : vector<1x128xf32> to vector<8x128xf32>
    %83 = arith.addf %81, %82 : vector<8x128xf32>
    %84 = arith.truncf %69 : vector<8x128xf32> to vector<8x128xbf16>
    %cst_39 = arith.constant dense<0.000000e+00> : vector<8x128xf32>
    %85 = tpu.matmul %84, %7, %cst_39 {dimension_numbers = #tpu.dot_dimension_numbers<[1], [0], [0], [1], [0, 0, 1, 1], [], []>} : vector<8x128xbf16>, vector<128x128xbf16>, vector<8x128xf32> -> vector<8x128xf32>
    %86 = arith.addf %83, %85 : vector<8x128xf32>
    %87 = math.tanh %86 : vector<8x128xf32>
    %88 = arith.truncf %87 : vector<8x128xf32> to vector<8x128xbf16>
    %c3 = arith.constant 3 : index
    %c0_40 = arith.constant 0 : index
    %c0_41 = arith.constant 0 : index
    %89 = vector.load %arg15[%c3, %c0_40, %c0_41] : memref<8x8x128xbf16, #tpu.memory_space<vmem>>, vector<1x8x128xbf16>
    %90 = vector.shape_cast %89 : vector<1x8x128xbf16> to vector<8x128xbf16>
    %91 = vector.shape_cast %88 : vector<8x128xbf16> to vector<1x8x128xbf16>
    tpu.vector_store %arg15[%c3, %c0_40, %c0_41], %91 {strides = array<i32>} : memref<8x8x128xbf16, #tpu.memory_space<vmem>>, vector<1x8x128xbf16>,
    %92 = vector.extract_strided_slice %15 {offsets = [4, 0, 0], sizes = [1, 8, 128], strides = [1, 1, 1]} : vector<8x8x128xf32> to vector<1x8x128xf32>
    %93 = vector.shape_cast %92 : vector<1x8x128xf32> to vector<8x128xf32>
    %94 = arith.truncf %79 : vector<8x128xf32> to vector<8x128xbf16>
    %cst_42 = arith.constant dense<0.000000e+00> : vector<8x128xf32>
    %95 = tpu.matmul %94, %4, %cst_42 {dimension_numbers = #tpu.dot_dimension_numbers<[1], [0], [0], [1], [0, 0, 1, 1], [], []>} : vector<8x128xbf16>, vector<128x128xbf16>, vector<8x128xf32> -> vector<8x128xf32>
    %96 = arith.addf %93, %95 : vector<8x128xf32>
    %97 = math.tanh %96 : vector<8x128xf32>
    %98 = arith.truncf %97 : vector<8x128xf32> to vector<8x128xbf16>
    %cst_43 = arith.constant dense<0.000000e+00> : vector<8x128xf32>
    %99 = tpu.matmul %98, %6, %cst_43 {dimension_numbers = #tpu.dot_dimension_numbers<[1], [0], [0], [1], [0, 0, 1, 1], [], []>} : vector<8x128xbf16>, vector<128x128xbf16>, vector<8x128xf32> -> vector<8x128xf32>
    %100 = vector.broadcast %8 : vector<1x128xf32> to vector<8x128xf32>
    %101 = arith.addf %99, %100 : vector<8x128xf32>
    %102 = arith.truncf %87 : vector<8x128xf32> to vector<8x128xbf16>
    %cst_44 = arith.constant dense<0.000000e+00> : vector<8x128xf32>
    %103 = tpu.matmul %102, %7, %cst_44 {dimension_numbers = #tpu.dot_dimension_numbers<[1], [0], [0], [1], [0, 0, 1, 1], [], []>} : vector<8x128xbf16>, vector<128x128xbf16>, vector<8x128xf32> -> vector<8x128xf32>
    %104 = arith.addf %101, %103 : vector<8x128xf32>
    %105 = math.tanh %104 : vector<8x128xf32>
    %106 = arith.truncf %105 : vector<8x128xf32> to vector<8x128xbf16>
    %c4 = arith.constant 4 : index
    %c0_45 = arith.constant 0 : index
    %c0_46 = arith.constant 0 : index
    %107 = vector.load %arg15[%c4, %c0_45, %c0_46] : memref<8x8x128xbf16, #tpu.memory_space<vmem>>, vector<1x8x128xbf16>
    %108 = vector.shape_cast %107 : vector<1x8x128xbf16> to vector<8x128xbf16>
    %109 = vector.shape_cast %106 : vector<8x128xbf16> to vector<1x8x128xbf16>
    tpu.vector_store %arg15[%c4, %c0_45, %c0_46], %109 {strides = array<i32>} : memref<8x8x128xbf16, #tpu.memory_space<vmem>>, vector<1x8x128xbf16>,
    %110 = vector.extract_strided_slice %15 {offsets = [5, 0, 0], sizes = [1, 8, 128], strides = [1, 1, 1]} : vector<8x8x128xf32> to vector<1x8x128xf32>
    %111 = vector.shape_cast %110 : vector<1x8x128xf32> to vector<8x128xf32>
    %112 = arith.truncf %97 : vector<8x128xf32> to vector<8x128xbf16>
    %cst_47 = arith.constant dense<0.000000e+00> : vector<8x128xf32>
    %113 = tpu.matmul %112, %4, %cst_47 {dimension_numbers = #tpu.dot_dimension_numbers<[1], [0], [0], [1], [0, 0, 1, 1], [], []>} : vector<8x128xbf16>, vector<128x128xbf16>, vector<8x128xf32> -> vector<8x128xf32>
    %114 = arith.addf %111, %113 : vector<8x128xf32>
    %115 = math.tanh %114 : vector<8x128xf32>
    %116 = arith.truncf %115 : vector<8x128xf32> to vector<8x128xbf16>
    %cst_48 = arith.constant dense<0.000000e+00> : vector<8x128xf32>
    %117 = tpu.matmul %116, %6, %cst_48 {dimension_numbers = #tpu.dot_dimension_numbers<[1], [0], [0], [1], [0, 0, 1, 1], [], []>} : vector<8x128xbf16>, vector<128x128xbf16>, vector<8x128xf32> -> vector<8x128xf32>
    %118 = vector.broadcast %8 : vector<1x128xf32> to vector<8x128xf32>
    %119 = arith.addf %117, %118 : vector<8x128xf32>
    %120 = arith.truncf %105 : vector<8x128xf32> to vector<8x128xbf16>
    %cst_49 = arith.constant dense<0.000000e+00> : vector<8x128xf32>
    %121 = tpu.matmul %120, %7, %cst_49 {dimension_numbers = #tpu.dot_dimension_numbers<[1], [0], [0], [1], [0, 0, 1, 1], [], []>} : vector<8x128xbf16>, vector<128x128xbf16>, vector<8x128xf32> -> vector<8x128xf32>
    %122 = arith.addf %119, %121 : vector<8x128xf32>
    %123 = math.tanh %122 : vector<8x128xf32>
    %124 = arith.truncf %123 : vector<8x128xf32> to vector<8x128xbf16>
    %c5 = arith.constant 5 : index
    %c0_50 = arith.constant 0 : index
    %c0_51 = arith.constant 0 : index
    %125 = vector.load %arg15[%c5, %c0_50, %c0_51] : memref<8x8x128xbf16, #tpu.memory_space<vmem>>, vector<1x8x128xbf16>
    %126 = vector.shape_cast %125 : vector<1x8x128xbf16> to vector<8x128xbf16>
    %127 = vector.shape_cast %124 : vector<8x128xbf16> to vector<1x8x128xbf16>
    tpu.vector_store %arg15[%c5, %c0_50, %c0_51], %127 {strides = array<i32>} : memref<8x8x128xbf16, #tpu.memory_space<vmem>>, vector<1x8x128xbf16>,
    %128 = vector.extract_strided_slice %15 {offsets = [6, 0, 0], sizes = [1, 8, 128], strides = [1, 1, 1]} : vector<8x8x128xf32> to vector<1x8x128xf32>
    %129 = vector.shape_cast %128 : vector<1x8x128xf32> to vector<8x128xf32>
    %130 = arith.truncf %115 : vector<8x128xf32> to vector<8x128xbf16>
    %cst_52 = arith.constant dense<0.000000e+00> : vector<8x128xf32>
    %131 = tpu.matmul %130, %4, %cst_52 {dimension_numbers = #tpu.dot_dimension_numbers<[1], [0], [0], [1], [0, 0, 1, 1], [], []>} : vector<8x128xbf16>, vector<128x128xbf16>, vector<8x128xf32> -> vector<8x128xf32>
    %132 = arith.addf %129, %131 : vector<8x128xf32>
    %133 = math.tanh %132 : vector<8x128xf32>
    %134 = arith.truncf %133 : vector<8x128xf32> to vector<8x128xbf16>
    %cst_53 = arith.constant dense<0.000000e+00> : vector<8x128xf32>
    %135 = tpu.matmul %134, %6, %cst_53 {dimension_numbers = #tpu.dot_dimension_numbers<[1], [0], [0], [1], [0, 0, 1, 1], [], []>} : vector<8x128xbf16>, vector<128x128xbf16>, vector<8x128xf32> -> vector<8x128xf32>
    %136 = vector.broadcast %8 : vector<1x128xf32> to vector<8x128xf32>
    %137 = arith.addf %135, %136 : vector<8x128xf32>
    %138 = arith.truncf %123 : vector<8x128xf32> to vector<8x128xbf16>
    %cst_54 = arith.constant dense<0.000000e+00> : vector<8x128xf32>
    %139 = tpu.matmul %138, %7, %cst_54 {dimension_numbers = #tpu.dot_dimension_numbers<[1], [0], [0], [1], [0, 0, 1, 1], [], []>} : vector<8x128xbf16>, vector<128x128xbf16>, vector<8x128xf32> -> vector<8x128xf32>
    %140 = arith.addf %137, %139 : vector<8x128xf32>
    %141 = math.tanh %140 : vector<8x128xf32>
    %142 = arith.truncf %141 : vector<8x128xf32> to vector<8x128xbf16>
    %c6 = arith.constant 6 : index
    %c0_55 = arith.constant 0 : index
    %c0_56 = arith.constant 0 : index
    %143 = vector.load %arg15[%c6, %c0_55, %c0_56] : memref<8x8x128xbf16, #tpu.memory_space<vmem>>, vector<1x8x128xbf16>
    %144 = vector.shape_cast %143 : vector<1x8x128xbf16> to vector<8x128xbf16>
    %145 = vector.shape_cast %142 : vector<8x128xbf16> to vector<1x8x128xbf16>
    tpu.vector_store %arg15[%c6, %c0_55, %c0_56], %145 {strides = array<i32>} : memref<8x8x128xbf16, #tpu.memory_space<vmem>>, vector<1x8x128xbf16>,
    %146 = vector.extract_strided_slice %15 {offsets = [7, 0, 0], sizes = [1, 8, 128], strides = [1, 1, 1]} : vector<8x8x128xf32> to vector<1x8x128xf32>
    %147 = vector.shape_cast %146 : vector<1x8x128xf32> to vector<8x128xf32>
    %148 = arith.truncf %133 : vector<8x128xf32> to vector<8x128xbf16>
    %cst_57 = arith.constant dense<0.000000e+00> : vector<8x128xf32>
    %149 = tpu.matmul %148, %4, %cst_57 {dimension_numbers = #tpu.dot_dimension_numbers<[1], [0], [0], [1], [0, 0, 1, 1], [], []>} : vector<8x128xbf16>, vector<128x128xbf16>, vector<8x128xf32> -> vector<8x128xf32>
    %150 = arith.addf %147, %149 : vector<8x128xf32>
    %151 = math.tanh %150 : vector<8x128xf32>
    %152 = arith.truncf %151 : vector<8x128xf32> to vector<8x128xbf16>
    %cst_58 = arith.constant dense<0.000000e+00> : vector<8x128xf32>
    %153 = tpu.matmul %152, %6, %cst_58 {dimension_numbers = #tpu.dot_dimension_numbers<[1], [0], [0], [1], [0, 0, 1, 1], [], []>} : vector<8x128xbf16>, vector<128x128xbf16>, vector<8x128xf32> -> vector<8x128xf32>
    %154 = vector.broadcast %8 : vector<1x128xf32> to vector<8x128xf32>
    %155 = arith.addf %153, %154 : vector<8x128xf32>
    %156 = arith.truncf %141 : vector<8x128xf32> to vector<8x128xbf16>
    %cst_59 = arith.constant dense<0.000000e+00> : vector<8x128xf32>
    %157 = tpu.matmul %156, %7, %cst_59 {dimension_numbers = #tpu.dot_dimension_numbers<[1], [0], [0], [1], [0, 0, 1, 1], [], []>} : vector<8x128xbf16>, vector<128x128xbf16>, vector<8x128xf32> -> vector<8x128xf32>
    %158 = arith.addf %155, %157 : vector<8x128xf32>
    %159 = math.tanh %158 : vector<8x128xf32>
    %160 = arith.truncf %159 : vector<8x128xf32> to vector<8x128xbf16>
    %c7 = arith.constant 7 : index
    %c0_60 = arith.constant 0 : index
    %c0_61 = arith.constant 0 : index
    %161 = vector.load %arg15[%c7, %c0_60, %c0_61] : memref<8x8x128xbf16, #tpu.memory_space<vmem>>, vector<1x8x128xbf16>
    %162 = vector.shape_cast %161 : vector<1x8x128xbf16> to vector<8x128xbf16>
    %163 = vector.shape_cast %160 : vector<8x128xbf16> to vector<1x8x128xbf16>
    tpu.vector_store %arg15[%c7, %c0_60, %c0_61], %163 {strides = array<i32>} : memref<8x8x128xbf16, #tpu.memory_space<vmem>>, vector<1x8x128xbf16>,
    %c0_62 = arith.constant 0 : index
    %c0_63 = arith.constant 0 : index
    %c0_64 = arith.constant 0 : index
    %164 = vector.load %arg14[%c0_62, %c0_63, %c0_64] : memref<2x8x128xf32, #tpu.memory_space<vmem>>, vector<1x8x128xf32>
    %165 = vector.shape_cast %164 : vector<1x8x128xf32> to vector<8x128xf32>
    %166 = vector.shape_cast %151 : vector<8x128xf32> to vector<1x8x128xf32>
    tpu.vector_store %arg14[%c0_62, %c0_63, %c0_64], %166 {strides = array<i32>} : memref<2x8x128xf32, #tpu.memory_space<vmem>>, vector<1x8x128xf32>,
    %c1_65 = arith.constant 1 : index
    %c0_66 = arith.constant 0 : index
    %c0_67 = arith.constant 0 : index
    %167 = vector.load %arg14[%c1_65, %c0_66, %c0_67] : memref<2x8x128xf32, #tpu.memory_space<vmem>>, vector<1x8x128xf32>
    %168 = vector.shape_cast %167 : vector<1x8x128xf32> to vector<8x128xf32>
    %169 = vector.shape_cast %159 : vector<8x128xf32> to vector<1x8x128xf32>
    tpu.vector_store %arg14[%c1_65, %c0_66, %c0_67], %169 {strides = array<i32>} : memref<2x8x128xf32, #tpu.memory_space<vmem>>, vector<1x8x128xf32>,
    %c0_68 = arith.constant 0 : index
    %c0_69 = arith.constant 0 : index
    %c0_70 = arith.constant 0 : index
    %170 = vector.load %arg15[%c0_68, %c0_69, %c0_70] : memref<8x8x128xbf16, #tpu.memory_space<vmem>>, vector<8x8x128xbf16>
    %171 = vector.shape_cast %170 : vector<8x8x128xbf16> to vector<64x128xbf16>
    %c0_71 = arith.constant 0 : index
    %c0_72 = arith.constant 0 : index
    %172 = vector.load %arg9[%c0_71, %c0_72] : memref<128x128xbf16, #tpu.memory_space<vmem>>, vector<128x128xbf16>
    %cst_73 = arith.constant dense<0.000000e+00> : vector<64x128xf32>
    %173 = tpu.matmul %171, %172, %cst_73 {dimension_numbers = #tpu.dot_dimension_numbers<[1], [0], [0], [1], [0, 0, 1, 1], [], []>} : vector<64x128xbf16>, vector<128x128xbf16>, vector<64x128xf32> -> vector<64x128xf32>
    %c0_74 = arith.constant 0 : index
    %c0_75 = arith.constant 0 : index
    %174 = vector.load %arg10[%c0_74, %c0_75] : memref<1x128xf32, #tpu.memory_space<vmem>>, vector<1x128xf32>
    %175 = vector.broadcast %174 : vector<1x128xf32> to vector<64x128xf32>
    %176 = arith.addf %173, %175 : vector<64x128xf32>
    %cst_76 = arith.constant 0.000000e+00 : f32
    %177 = vector.broadcast %cst_76 : f32 to vector<64x128xf32>
    %178 = arith.maximumf %176, %177 : vector<64x128xf32>
    %179 = arith.truncf %178 : vector<64x128xf32> to vector<64x128xbf16>
    %c0_77 = arith.constant 0 : index
    %c0_78 = arith.constant 0 : index
    %180 = vector.load %arg11[%c0_77, %c0_78] : memref<128x128xbf16, #tpu.memory_space<vmem>>, vector<128x128xbf16>
    %cst_79 = arith.constant dense<0.000000e+00> : vector<64x128xf32>
    %181 = tpu.matmul %179, %180, %cst_79 {dimension_numbers = #tpu.dot_dimension_numbers<[1], [0], [0], [1], [0, 0, 1, 1], [], []>} : vector<64x128xbf16>, vector<128x128xbf16>, vector<64x128xf32> -> vector<64x128xf32>
    %c0_80 = arith.constant 0 : index
    %c0_81 = arith.constant 0 : index
    %182 = vector.load %arg12[%c0_80, %c0_81] : memref<1x128xf32, #tpu.memory_space<vmem>>, vector<1x128xf32>
    %183 = vector.broadcast %182 : vector<1x128xf32> to vector<64x128xf32>
    %184 = arith.addf %181, %183 : vector<64x128xf32>
    %185 = vector.shape_cast %184 : vector<64x128xf32> to vector<8x8x128xf32>
    %c0_82 = arith.constant 0 : index
    %c0_83 = arith.constant 0 : index
    %c0_84 = arith.constant 0 : index
    %186 = vector.load %arg13[%c0_82, %c0_83, %c0_84] : memref<8x8x128xf32, #tpu.memory_space<vmem>>, vector<8x8x128xf32>
    tpu.vector_store %arg13[%c0_82, %c0_83, %c0_84], %185 {strides = array<i32>} : memref<8x8x128xf32, #tpu.memory_space<vmem>>, vector<8x8x128xf32>,
    return
  }
  func.func @transform_0(%arg0: i32, %arg1: i32) -> (i32, i32, i32) {
    %c0_i32 = arith.constant 0 : i32
    %c0_i32_0 = arith.constant 0 : i32
    return %arg1, %arg0, %c0_i32 : i32, i32, i32
  }
  func.func @transform_1(%arg0: i32, %arg1: i32) -> (i32, i32) {
    %c0_i32 = arith.constant 0 : i32
    %c0_i32_0 = arith.constant 0 : i32
    %c0_i32_1 = arith.constant 0 : i32
    return %c0_i32, %c0_i32_0 : i32, i32
  }
  func.func @transform_2(%arg0: i32, %arg1: i32) -> (i32, i32) {
    %c0_i32 = arith.constant 0 : i32
    %c0_i32_0 = arith.constant 0 : i32
    %c0_i32_1 = arith.constant 0 : i32
    return %c0_i32, %c0_i32_0 : i32, i32
  }
  func.func @transform_3(%arg0: i32, %arg1: i32) -> (i32, i32) {
    %c0_i32 = arith.constant 0 : i32
    %c0_i32_0 = arith.constant 0 : i32
    %c0_i32_1 = arith.constant 0 : i32
    return %c0_i32, %c0_i32_0 : i32, i32
  }
  func.func @transform_4(%arg0: i32, %arg1: i32) -> (i32, i32) {
    %c0_i32 = arith.constant 0 : i32
    %c0_i32_0 = arith.constant 0 : i32
    %c0_i32_1 = arith.constant 0 : i32
    return %c0_i32, %c0_i32_0 : i32, i32
  }
  func.func @transform_5(%arg0: i32, %arg1: i32) -> (i32, i32) {
    %c0_i32 = arith.constant 0 : i32
    %c0_i32_0 = arith.constant 0 : i32
    %c0_i32_1 = arith.constant 0 : i32
    return %c0_i32, %c0_i32_0 : i32, i32
  }
  func.func @transform_6(%arg0: i32, %arg1: i32) -> (i32, i32) {
    %c0_i32 = arith.constant 0 : i32
    %c0_i32_0 = arith.constant 0 : i32
    %c0_i32_1 = arith.constant 0 : i32
    return %c0_i32, %c0_i32_0 : i32, i32
  }
  func.func @transform_7(%arg0: i32, %arg1: i32) -> (i32, i32) {
    %c0_i32 = arith.constant 0 : i32
    %c0_i32_0 = arith.constant 0 : i32
    %c0_i32_1 = arith.constant 0 : i32
    return %c0_i32, %c0_i32_0 : i32, i32
  }
  func.func @transform_8(%arg0: i32, %arg1: i32) -> (i32, i32) {
    %c0_i32 = arith.constant 0 : i32
    %c0_i32_0 = arith.constant 0 : i32
    %c0_i32_1 = arith.constant 0 : i32
    return %c0_i32, %c0_i32_0 : i32, i32
  }
  func.func @transform_9(%arg0: i32, %arg1: i32) -> (i32, i32) {
    %c0_i32 = arith.constant 0 : i32
    %c0_i32_0 = arith.constant 0 : i32
    %c0_i32_1 = arith.constant 0 : i32
    return %c0_i32, %c0_i32_0 : i32, i32
  }
  func.func @transform_10(%arg0: i32, %arg1: i32) -> (i32, i32) {
    %c0_i32 = arith.constant 0 : i32
    %c0_i32_0 = arith.constant 0 : i32
    %c0_i32_1 = arith.constant 0 : i32
    return %c0_i32, %c0_i32_0 : i32, i32
  }
  func.func @transform_11(%arg0: i32, %arg1: i32) -> (i32, i32, i32) {
    %c0_i32 = arith.constant 0 : i32
    %c0_i32_0 = arith.constant 0 : i32
    return %arg1, %arg0, %c0_i32 : i32, i32, i32
  }
}

</mosaic_0001>

<llo_original>
// kernel: rnn_model_forward.1
$region0: #{rnn_model_forward.1}
  #allocation0 [shape = 'u32[]', space=smem, size = 0x4, offset = 0x4, fixed_abs, tag = 'smem constant byte address 0x4 - core index']
  #allocation1 [shape = 'u32[72,128]{1,0:T(1,128)}', space=vmem, size = 0x9000, scoped, tag = 'internal scratch']
  #allocation2 [shape = 'f32[2,8,128]{2,1,0:T(8,128)}', space=vmem, size = 0x2000, scoped, tag = 'scratch operand']
  #allocation3 [shape = 'bf16[8,8,128]{2,1,0:T(8,128)(2,1)}', space=vmem, size = 0x4000, scoped, tag = 'scratch operand']
  %s0 = inlined_call_operand.vmem [shape: f32[8,8,16], index: 0, kind: input, shape index: {}]
  %s1 = inlined_call_operand.vmem [shape: bf16[16,128], index: 1, kind: input, shape index: {}]
  %s2 = inlined_call_operand.vmem [shape: bf16[128,128], index: 2, kind: input, shape index: {}]
  %s3 = inlined_call_operand.vmem [shape: f32[1,128], index: 3, kind: input, shape index: {}]
  %s4 = inlined_call_operand.vmem [shape: bf16[128,128], index: 4, kind: input, shape index: {}]
  %s5 = inlined_call_operand.vmem [shape: bf16[128,128], index: 5, kind: input, shape index: {}]
  %s6 = inlined_call_operand.vmem [shape: f32[1,128], index: 6, kind: input, shape index: {}]
  %s7 = inlined_call_operand.vmem [shape: bf16[128,128], index: 7, kind: input, shape index: {}]
  %s8 = inlined_call_operand.vmem [shape: f32[1,128], index: 8, kind: input, shape index: {}]
  %s9 = inlined_call_operand.vmem [shape: bf16[128,128], index: 9, kind: input, shape index: {}]
  %s10 = inlined_call_operand.vmem [shape: f32[1,128], index: 10, kind: input, shape index: {}]
  %s11 = inlined_call_operand.vmem [shape: f32[8,8,128], index: 11, kind: output, shape index: {}]
  %s12 = sld [smem:[#allocation0]]
  $region58: #{rnn_model_forward.1} parent=0
    _
  %s14 = ssub.s32 1, %s12
  %s15 = scalar_select 0, %s14, %s12
  // Predicated region
  $region2: #{rnn_model_forward.1} parent=0 // pred_check
    _
  $region3: #{rnn_model_forward.1} parent=0 // pred_check_branch
    %17 = sbr.rel (0) target = $region5
  $region4: #{rnn_model_forward.1} parent=0 // pred_region
    _
  $region5: #{rnn_model_forward.1} parent=0 // pred_fallthru
    _
  // Predicated region
  $region6: #{rnn_model_forward.1} parent=0 // pred_check
    _
  $region7: #{rnn_model_forward.1} parent=0 // pred_check_branch
    %19 = sbr.rel (0) target = $region9
  $region8: #{rnn_model_forward.1} parent=0 // pred_region
    _
  $region9: #{rnn_model_forward.1} parent=0 // pred_fallthru
    _
  // Predicated region
  $region10: #{rnn_model_forward.1} parent=0 // pred_check
    _
  $region11: #{rnn_model_forward.1} parent=0 // pred_check_branch
    %21 = sbr.rel (0) target = $region13
  $region12: #{rnn_model_forward.1} parent=0 // pred_region
    _
  $region13: #{rnn_model_forward.1} parent=0 // pred_fallthru
    _
  // Predicated region
  $region14: #{rnn_model_forward.1} parent=0 // pred_check
    _
  $region15: #{rnn_model_forward.1} parent=0 // pred_check_branch
    %23 = sbr.rel (0) target = $region17
  $region16: #{rnn_model_forward.1} parent=0 // pred_region
    _
  $region17: #{rnn_model_forward.1} parent=0 // pred_fallthru
    _
  // Predicated region
  $region18: #{rnn_model_forward.1} parent=0 // pred_check
    _
  $region19: #{rnn_model_forward.1} parent=0 // pred_check_branch
    %25 = sbr.rel (0) target = $region21
  $region20: #{rnn_model_forward.1} parent=0 // pred_region
    _
  $region21: #{rnn_model_forward.1} parent=0 // pred_fallthru
    _
  // Predicated region
  $region22: #{rnn_model_forward.1} parent=0 // pred_check
    _
  $region23: #{rnn_model_forward.1} parent=0 // pred_check_branch
    %27 = sbr.rel (0) target = $region25
  $region24: #{rnn_model_forward.1} parent=0 // pred_region
    _
  $region25: #{rnn_model_forward.1} parent=0 // pred_fallthru
    _
  // Predicated region
  $region26: #{rnn_model_forward.1} parent=0 // pred_check
    _
  $region27: #{rnn_model_forward.1} parent=0 // pred_check_branch
    %29 = sbr.rel (0) target = $region29
  $region28: #{rnn_model_forward.1} parent=0 // pred_region
    _
  $region29: #{rnn_model_forward.1} parent=0 // pred_fallthru
    _
  // Predicated region
  $region30: #{rnn_model_forward.1} parent=0 // pred_check
    _
  $region31: #{rnn_model_forward.1} parent=0 // pred_check_branch
    %31 = sbr.rel (0) target = $region33
  $region32: #{rnn_model_forward.1} parent=0 // pred_region
    _
  $region33: #{rnn_model_forward.1} parent=0 // pred_fallthru
    _
  // Predicated region
  $region34: #{rnn_model_forward.1} parent=0 // pred_check
    _
  $region35: #{rnn_model_forward.1} parent=0 // pred_check_branch
    %33 = sbr.rel (0) target = $region37
  $region36: #{rnn_model_forward.1} parent=0 // pred_region
    _
  $region37: #{rnn_model_forward.1} parent=0 // pred_fallthru
    _
  // Predicated region
  $region38: #{rnn_model_forward.1} parent=0 // pred_check
    _
  $region39: #{rnn_model_forward.1} parent=0 // pred_check_branch
    %35 = sbr.rel (0) target = $region41
  $region40: #{rnn_model_forward.1} parent=0 // pred_region
    _
  $region41: #{rnn_model_forward.1} parent=0 // pred_fallthru
    _
  // Predicated region
  $region42: #{rnn_model_forward.1} parent=0 // pred_check
    _
  $region43: #{rnn_model_forward.1} parent=0 // pred_check_branch
    %37 = sbr.rel (0) target = $region45
  $region44: #{rnn_model_forward.1} parent=0 // pred_region
    _
  $region45: #{rnn_model_forward.1} parent=0 // pred_fallthru
    _
  %p39 = scmp.eq.s32.totalorder 0, 0
  // Predicated region
  $region46: #{rnn_model_forward.1} parent=0 // pred_check
    %p40 = pneg %p39
  $region47: #{rnn_model_forward.1} parent=0 // pred_check_branch
    %42 = sbr.rel (%p40) target = $region49
  $region48: #{rnn_model_forward.1} parent=0 // pred_region
    %43 = vst [vmem:[#allocation2] sm:$0xff] 0.0
    %44 = vst [vmem:[#allocation2 + $0x8] sm:$0xff] 0.0
  $region49: #{rnn_model_forward.1} parent=0 // pred_fallthru
    _
  %v45 = vld [vmem:[%s1] sm:$0xf]
  %v46 = vld [vmem:[%s1 + $0x4] sm:$0xf]
  %v47 = vld [vmem:[%s2] sm:$0xf]
  %v48 = vld [vmem:[%s2 + $0x4] sm:$0xf]
  %v49 = vld [vmem:[%s2 + $0x8] sm:$0xf]
  %v50 = vld [vmem:[%s2 + $0xc] sm:$0xf]
  %v51 = vld [vmem:[%s2 + $0x10] sm:$0xf]
  %v52 = vld [vmem:[%s2 + $0x14] sm:$0xf]
  %v53 = vld [vmem:[%s2 + $0x18] sm:$0xf]
  %v54 = vld [vmem:[%s2 + $0x1c] sm:$0xf]
  %v55 = vld [vmem:[%s2 + $0x20] sm:$0xf]
  %v56 = vld [vmem:[%s2 + $0x24] sm:$0xf]
  %v57 = vld [vmem:[%s2 + $0x28] sm:$0xf]
  %v58 = vld [vmem:[%s2 + $0x2c] sm:$0xf]
  %v59 = vld [vmem:[%s2 + $0x30] sm:$0xf]
  %v60 = vld [vmem:[%s2 + $0x34] sm:$0xf]
  %v61 = vld [vmem:[%s2 + $0x38] sm:$0xf]
  %v62 = vld [vmem:[%s2 + $0x3c] sm:$0xf]
  %v63 = vld [vmem:[%s3] sm:$0x1]
  %v64 = vld [vmem:[%s4] sm:$0xf]
  %v65 = vld [vmem:[%s4 + $0x4] sm:$0xf]
  %v66 = vld [vmem:[%s4 + $0x8] sm:$0xf]
  %v67 = vld [vmem:[%s4 + $0xc] sm:$0xf]
  %v68 = vld [vmem:[%s4 + $0x10] sm:$0xf]
  %v69 = vld [vmem:[%s4 + $0x14] sm:$0xf]
  %v70 = vld [vmem:[%s4 + $0x18] sm:$0xf]
  %v71 = vld [vmem:[%s4 + $0x1c] sm:$0xf]
  %v72 = vld [vmem:[%s4 + $0x20] sm:$0xf]
  %v73 = vld [vmem:[%s4 + $0x24] sm:$0xf]
  %v74 = vld [vmem:[%s4 + $0x28] sm:$0xf]
  %v75 = vld [vmem:[%s4 + $0x2c] sm:$0xf]
  %v76 = vld [vmem:[%s4 + $0x30] sm:$0xf]
  %v77 = vld [vmem:[%s4 + $0x34] sm:$0xf]
  %v78 = vld [vmem:[%s4 + $0x38] sm:$0xf]
  %v79 = vld [vmem:[%s4 + $0x3c] sm:$0xf]
  %v80 = vld [vmem:[%s5] sm:$0xf]
  %v81 = vld [vmem:[%s5 + $0x4] sm:$0xf]
  %v82 = vld [vmem:[%s5 + $0x8] sm:$0xf]
  %v83 = vld [vmem:[%s5 + $0xc] sm:$0xf]
  %v84 = vld [vmem:[%s5 + $0x10] sm:$0xf]
  %v85 = vld [vmem:[%s5 + $0x14] sm:$0xf]
  %v86 = vld [vmem:[%s5 + $0x18] sm:$0xf]
  %v87 = vld [vmem:[%s5 + $0x1c] sm:$0xf]
  %v88 = vld [vmem:[%s5 + $0x20] sm:$0xf]
  %v89 = vld [vmem:[%s5 + $0x24] sm:$0xf]
  %v90 = vld [vmem:[%s5 + $0x28] sm:$0xf]
  %v91 = vld [vmem:[%s5 + $0x2c] sm:$0xf]
  %v92 = vld [vmem:[%s5 + $0x30] sm:$0xf]
  %v93 = vld [vmem:[%s5 + $0x34] sm:$0xf]
  %v94 = vld [vmem:[%s5 + $0x38] sm:$0xf]
  %v95 = vld [vmem:[%s5 + $0x3c] sm:$0xf]
  %v96 = vld [vmem:[%s6] sm:$0x1]
  %v97 = vld [vmem:[%s0] sm:$0xff]
  %v98 = vld [vmem:[%s0 + $0x8] sm:$0xff]
  %v99 = vld [vmem:[%s0 + $0x10] sm:$0xff]
  %v100 = vld [vmem:[%s0 + $0x18] sm:$0xff]
  %v101 = vld [vmem:[%s0 + $0x20] sm:$0xff]
  %v102 = vld [vmem:[%s0 + $0x28] sm:$0xff]
  %v103 = vld [vmem:[%s0 + $0x30] sm:$0xff]
  %v104 = vld [vmem:[%s0 + $0x38] sm:$0xff]
  %v105 = vpack.c.bf16 %v97, %v97
  %v106 = vpack.c.bf16 %v98, %v98
  %v107 = vpack.c.bf16 %v99, %v99
  %v108 = vpack.c.bf16 %v100, %v100
  %v109 = vpack.c.bf16 %v101, %v101
  %v110 = vpack.c.bf16 %v102, %v102
  %v111 = vpack.c.bf16 %v103, %v103
  %v112 = vpack.c.bf16 %v104, %v104
  %v114 = vperm.slane %v63, 0
  %v124 = vunpack.c.l.b16 %v105
  %v125 = vunpack.c.l.b16 %v106
  %v126 = vunpack.c.l.b16 %v107
  %v127 = vunpack.c.l.b16 %v108
  %v128 = vunpack.c.l.b16 %v109
  %v129 = vunpack.c.l.b16 %v110
  %v130 = vunpack.c.l.b16 %v111
  %v131 = vunpack.c.l.b16 %v112
  %v132 = vpack.c.b16 %v125, %v124
  %v133 = vpack.c.b16 %v127, %v126
  %v134 = vpack.c.b16 %v129, %v128
  %v135 = vpack.c.b16 %v131, %v130
  %v138 = vunpack.c.l.b16 %v45
  %v139 = vunpack.c.l.b16 %v46
  %v140 = vpack.c.b16 %v139, %v138
  %vm142 = vcmask 130048
  %v144 = vsel %vm142, %v132, 0
  %v147 = vsel %vm142, %v133, 0
  %v150 = vsel %vm142, %v134, 0
  %v153 = vsel %vm142, %v135, 0
  %155 = vmatpush.bf16.msra.mxu0 0
  %156 = vmatpush.bf16.msra.mxu0 0
  %157 = vmatpush.bf16.msra.mxu0 0
  %158 = vmatpush.bf16.msra.mxu0 0
  %159 = vmatpush.bf16.msra.mxu0 0
  %160 = vmatpush.bf16.msra.mxu0 0
  %161 = vmatpush.bf16.msra.mxu0 0
  %162 = vmatpush.bf16.msra.mxu0 %v140
  %163 = vmatmul.bf16.gmra.mxu0 %v144
  %v164 = vpop.f32.mrf.mxu0
  %v165 = vadd.f32 %v114, %v164
  %v166 = vpop.f32.mrf.mxu0
  %v167 = vadd.f32 %v114, %v166
  %168 = vmatmul.bf16.gmra.mxu0 %v147
  %v169 = vpop.f32.mrf.mxu0
  %v170 = vadd.f32 %v114, %v169
  %v171 = vpop.f32.mrf.mxu0
  %v172 = vadd.f32 %v114, %v171
  %173 = vmatmul.bf16.gmra.mxu0 %v150
  %v174 = vpop.f32.mrf.mxu0
  %v175 = vadd.f32 %v114, %v174
  %v176 = vpop.f32.mrf.mxu0
  %v177 = vadd.f32 %v114, %v176
  %178 = vmatmul.bf16.gmra.mxu0 %v153
  %v179 = vpop.f32.mrf.mxu0
  %v180 = vadd.f32 %v114, %v179
  %v181 = vpop.f32.mrf.mxu0
  %v182 = vadd.f32 %v114, %v181
  %183 = vdwg.mxu0
  %v184 = vld [vmem:[#allocation2] sm:$0xff]
  %s185 = scalar_lea.vmem [#allocation2], 8
  %v186 = vld [vmem:[%s185] sm:$0xff]
  %v187 = vpack.c.bf16 %v184, %v184
  %v204 = vunpack.c.l.b16 %v47
  %v205 = vunpack.c.l.b16 %v48
  %v206 = vunpack.c.l.b16 %v49
  %v207 = vunpack.c.l.b16 %v50
  %v208 = vunpack.c.l.b16 %v51
  %v209 = vunpack.c.l.b16 %v52
  %v210 = vunpack.c.l.b16 %v53
  %v211 = vunpack.c.l.b16 %v54
  %v212 = vunpack.c.l.b16 %v55
  %v213 = vunpack.c.l.b16 %v56
  %v214 = vunpack.c.l.b16 %v57
  %v215 = vunpack.c.l.b16 %v58
  %v216 = vunpack.c.l.b16 %v59
  %v217 = vunpack.c.l.b16 %v60
  %v218 = vunpack.c.l.b16 %v61
  %v219 = vunpack.c.l.b16 %v62
  %v220 = vpack.c.b16 %v205, %v204
  %v221 = vpack.c.b16 %v207, %v206
  %v222 = vpack.c.b16 %v209, %v208
  %v223 = vpack.c.b16 %v211, %v210
  %v224 = vpack.c.b16 %v213, %v212
  %v225 = vpack.c.b16 %v215, %v214
  %v226 = vpack.c.b16 %v217, %v216
  %v227 = vpack.c.b16 %v219, %v218
  %236 = vmatpush.bf16.msra.mxu0 %v227
  %237 = vmatpush.bf16.msra.mxu0 %v226
  %238 = vmatpush.bf16.msra.mxu0 %v225
  %239 = vmatpush.bf16.msra.mxu0 %v224
  %240 = vmatpush.bf16.msra.mxu0 %v223
  %241 = vmatpush.bf16.msra.mxu0 %v222
  %242 = vmatpush.bf16.msra.mxu0 %v221
  %243 = vmatpush.bf16.msra.mxu0 %v220
  %244 = vmatmul.bf16.gmra.mxu0 %v187
  %v245 = vpop.f32.mrf.mxu0
  %v246 = vadd.f32 0.0, %v245
  %v247 = vpop.f32.mrf.mxu0
  %248 = vdwg.mxu0
  %v249 = vadd.f32 %v165, %v246
  %v250 = vtanh.pop %v249
  %v251 = vpack.c.bf16 %v250, %v250
  %v253 = vperm.slane %v96, 0
  %v271 = vunpack.c.l.b16 %v64
  %v272 = vunpack.c.l.b16 %v65
  %v273 = vunpack.c.l.b16 %v66
  %v274 = vunpack.c.l.b16 %v67
  %v275 = vunpack.c.l.b16 %v68
  %v276 = vunpack.c.l.b16 %v69
  %v277 = vunpack.c.l.b16 %v70
  %v278 = vunpack.c.l.b16 %v71
  %v279 = vunpack.c.l.b16 %v72
  %v280 = vunpack.c.l.b16 %v73
  %v281 = vunpack.c.l.b16 %v74
  %v282 = vunpack.c.l.b16 %v75
  %v283 = vunpack.c.l.b16 %v76
  %v284 = vunpack.c.l.b16 %v77
  %v285 = vunpack.c.l.b16 %v78
  %v286 = vunpack.c.l.b16 %v79
  %v287 = vpack.c.b16 %v272, %v271
  %v288 = vpack.c.b16 %v274, %v273
  %v289 = vpack.c.b16 %v276, %v275
  %v290 = vpack.c.b16 %v278, %v277
  %v291 = vpack.c.b16 %v280, %v279
  %v292 = vpack.c.b16 %v282, %v281
  %v293 = vpack.c.b16 %v284, %v283
  %v294 = vpack.c.b16 %v286, %v285
  %303 = vmatpush.bf16.msra.mxu0 %v294
  %304 = vmatpush.bf16.msra.mxu0 %v293
  %305 = vmatpush.bf16.msra.mxu0 %v292
  %306 = vmatpush.bf16.msra.mxu0 %v291
  %307 = vmatpush.bf16.msra.mxu0 %v290
  %308 = vmatpush.bf16.msra.mxu0 %v289
  %309 = vmatpush.bf16.msra.mxu0 %v288
  %310 = vmatpush.bf16.msra.mxu0 %v287
  %311 = vmatmul.bf16.gmra.mxu0 %v251
  %v312 = vpop.f32.mrf.mxu0
  %v313 = vadd.f32 %v253, %v312
  %v314 = vpop.f32.mrf.mxu0
  %315 = vdwg.mxu0
  %v316 = vpack.c.bf16 %v186, %v186
  %v333 = vunpack.c.l.b16 %v80
  %v334 = vunpack.c.l.b16 %v81
  %v335 = vunpack.c.l.b16 %v82
  %v336 = vunpack.c.l.b16 %v83
  %v337 = vunpack.c.l.b16 %v84
  %v338 = vunpack.c.l.b16 %v85
  %v339 = vunpack.c.l.b16 %v86
  %v340 = vunpack.c.l.b16 %v87
  %v341 = vunpack.c.l.b16 %v88
  %v342 = vunpack.c.l.b16 %v89
  %v343 = vunpack.c.l.b16 %v90
  %v344 = vunpack.c.l.b16 %v91
  %v345 = vunpack.c.l.b16 %v92
  %v346 = vunpack.c.l.b16 %v93
  %v347 = vunpack.c.l.b16 %v94
  %v348 = vunpack.c.l.b16 %v95
  %v349 = vpack.c.b16 %v334, %v333
  %v350 = vpack.c.b16 %v336, %v335
  %v351 = vpack.c.b16 %v338, %v337
  %v352 = vpack.c.b16 %v340, %v339
  %v353 = vpack.c.b16 %v342, %v341
  %v354 = vpack.c.b16 %v344, %v343
  %v355 = vpack.c.b16 %v346, %v345
  %v356 = vpack.c.b16 %v348, %v347
  %365 = vmatpush.bf16.msra.mxu0 %v356
  %366 = vmatpush.bf16.msra.mxu0 %v355
  %367 = vmatpush.bf16.msra.mxu0 %v354
  %368 = vmatpush.bf16.msra.mxu0 %v353
  %369 = vmatpush.bf16.msra.mxu0 %v352
  %370 = vmatpush.bf16.msra.mxu0 %v351
  %371 = vmatpush.bf16.msra.mxu0 %v350
  %372 = vmatpush.bf16.msra.mxu0 %v349
  %373 = vmatmul.bf16.gmra.mxu0 %v316
  %v374 = vpop.f32.mrf.mxu0
  %v375 = vadd.f32 0.0, %v374
  %v376 = vpop.f32.mrf.mxu0
  %377 = vdwg.mxu0
  %v378 = vadd.f32 %v313, %v375
  %v379 = vtanh.pop %v378
  %v380 = vpack.c.bf16 %v379, %v379
  %381 = vst [vmem:[#allocation3] sm:$0xf] %v380
  %382 = vmatpush.bf16.msra.mxu0 %v227
  %383 = vmatpush.bf16.msra.mxu0 %v226
  %384 = vmatpush.bf16.msra.mxu0 %v225
  %385 = vmatpush.bf16.msra.mxu0 %v224
  %386 = vmatpush.bf16.msra.mxu0 %v223
  %387 = vmatpush.bf16.msra.mxu0 %v222
  %388 = vmatpush.bf16.msra.mxu0 %v221
  %389 = vmatpush.bf16.msra.mxu0 %v220
  %390 = vmatmul.bf16.gmra.mxu0 %v251
  %v391 = vpop.f32.mrf.mxu0
  %v392 = vadd.f32 0.0, %v391
  %v393 = vpop.f32.mrf.mxu0
  %394 = vdwg.mxu0
  %v395 = vadd.f32 %v167, %v392
  %v396 = vtanh.pop %v395
  %v397 = vpack.c.bf16 %v396, %v396
  %398 = vmatpush.bf16.msra.mxu0 %v294
  %399 = vmatpush.bf16.msra.mxu0 %v293
  %400 = vmatpush.bf16.msra.mxu0 %v292
  %401 = vmatpush.bf16.msra.mxu0 %v291
  %402 = vmatpush.bf16.msra.mxu0 %v290
  %403 = vmatpush.bf16.msra.mxu0 %v289
  %404 = vmatpush.bf16.msra.mxu0 %v288
  %405 = vmatpush.bf16.msra.mxu0 %v287
  %406 = vmatmul.bf16.gmra.mxu0 %v397
  %v407 = vpop.f32.mrf.mxu0
  %v408 = vadd.f32 %v253, %v407
  %v409 = vpop.f32.mrf.mxu0
  %410 = vdwg.mxu0
  %411 = vmatpush.bf16.msra.mxu0 %v356
  %412 = vmatpush.bf16.msra.mxu0 %v355
  %413 = vmatpush.bf16.msra.mxu0 %v354
  %414 = vmatpush.bf16.msra.mxu0 %v353
  %415 = vmatpush.bf16.msra.mxu0 %v352
  %416 = vmatpush.bf16.msra.mxu0 %v351
  %417 = vmatpush.bf16.msra.mxu0 %v350
  %418 = vmatpush.bf16.msra.mxu0 %v349
  %419 = vmatmul.bf16.gmra.mxu0 %v380
  %v420 = vpop.f32.mrf.mxu0
  %v421 = vadd.f32 0.0, %v420
  %v422 = vpop.f32.mrf.mxu0
  %423 = vdwg.mxu0
  %v424 = vadd.f32 %v408, %v421
  %v425 = vtanh.pop %v424
  %v426 = vpack.c.bf16 %v425, %v425
  %s427 = scalar_lea.vmem [#allocation3], 4
  %428 = vst [vmem:[%s427] sm:$0xf] %v426
  %429 = vmatpush.bf16.msra.mxu0 %v227
  %430 = vmatpush.bf16.msra.mxu0 %v226
  %431 = vmatpush.bf16.msra.mxu0 %v225
  %432 = vmatpush.bf16.msra.mxu0 %v224
  %433 = vmatpush.bf16.msra.mxu0 %v223
  %434 = vmatpush.bf16.msra.mxu0 %v222
  %435 = vmatpush.bf16.msra.mxu0 %v221
  %436 = vmatpush.bf16.msra.mxu0 %v220
  %437 = vmatmul.bf16.gmra.mxu0 %v397
  %v438 = vpop.f32.mrf.mxu0
  %v439 = vadd.f32 0.0, %v438
  %v440 = vpop.f32.mrf.mxu0
  %441 = vdwg.mxu0
  %v442 = vadd.f32 %v170, %v439
  %v443 = vtanh.pop %v442
  %v444 = vpack.c.bf16 %v443, %v443
  %445 = vmatpush.bf16.msra.mxu0 %v294
  %446 = vmatpush.bf16.msra.mxu0 %v293
  %447 = vmatpush.bf16.msra.mxu0 %v292
  %448 = vmatpush.bf16.msra.mxu0 %v291
  %449 = vmatpush.bf16.msra.mxu0 %v290
  %450 = vmatpush.bf16.msra.mxu0 %v289
  %451 = vmatpush.bf16.msra.mxu0 %v288
  %452 = vmatpush.bf16.msra.mxu0 %v287
  %453 = vmatmul.bf16.gmra.mxu0 %v444
  %v454 = vpop.f32.mrf.mxu0
  %v455 = vadd.f32 %v253, %v454
  %v456 = vpop.f32.mrf.mxu0
  %457 = vdwg.mxu0
  %458 = vmatpush.bf16.msra.mxu0 %v356
  %459 = vmatpush.bf16.msra.mxu0 %v355
  %460 = vmatpush.bf16.msra.mxu0 %v354
  %461 = vmatpush.bf16.msra.mxu0 %v353
  %462 = vmatpush.bf16.msra.mxu0 %v352
  %463 = vmatpush.bf16.msra.mxu0 %v351
  %464 = vmatpush.bf16.msra.mxu0 %v350
  %465 = vmatpush.bf16.msra.mxu0 %v349
  %466 = vmatmul.bf16.gmra.mxu0 %v426
  %v467 = vpop.f32.mrf.mxu0
  %v468 = vadd.f32 0.0, %v467
  %v469 = vpop.f32.mrf.mxu0
  %470 = vdwg.mxu0
  %v471 = vadd.f32 %v455, %v468
  %v472 = vtanh.pop %v471
  %v473 = vpack.c.bf16 %v472, %v472
  %s474 = scalar_lea.vmem [#allocation3], 8
  %475 = vst [vmem:[%s474] sm:$0xf] %v473
  %476 = vmatpush.bf16.msra.mxu0 %v227
  %477 = vmatpush.bf16.msra.mxu0 %v226
  %478 = vmatpush.bf16.msra.mxu0 %v225
  %479 = vmatpush.bf16.msra.mxu0 %v224
  %480 = vmatpush.bf16.msra.mxu0 %v223
  %481 = vmatpush.bf16.msra.mxu0 %v222
  %482 = vmatpush.bf16.msra.mxu0 %v221
  %483 = vmatpush.bf16.msra.mxu0 %v220
  %484 = vmatmul.bf16.gmra.mxu0 %v444
  %v485 = vpop.f32.mrf.mxu0
  %v486 = vadd.f32 0.0, %v485
  %v487 = vpop.f32.mrf.mxu0
  %488 = vdwg.mxu0
  %v489 = vadd.f32 %v172, %v486
  %v490 = vtanh.pop %v489
  %v491 = vpack.c.bf16 %v490, %v490
  %492 = vmatpush.bf16.msra.mxu0 %v294
  %493 = vmatpush.bf16.msra.mxu0 %v293
  %494 = vmatpush.bf16.msra.mxu0 %v292
  %495 = vmatpush.bf16.msra.mxu0 %v291
  %496 = vmatpush.bf16.msra.mxu0 %v290
  %497 = vmatpush.bf16.msra.mxu0 %v289
  %498 = vmatpush.bf16.msra.mxu0 %v288
  %499 = vmatpush.bf16.msra.mxu0 %v287
  %500 = vmatmul.bf16.gmra.mxu0 %v491
  %v501 = vpop.f32.mrf.mxu0
  %v502 = vadd.f32 %v253, %v501
  %v503 = vpop.f32.mrf.mxu0
  %504 = vdwg.mxu0
  %505 = vmatpush.bf16.msra.mxu0 %v356
  %506 = vmatpush.bf16.msra.mxu0 %v355
  %507 = vmatpush.bf16.msra.mxu0 %v354
  %508 = vmatpush.bf16.msra.mxu0 %v353
  %509 = vmatpush.bf16.msra.mxu0 %v352
  %510 = vmatpush.bf16.msra.mxu0 %v351
  %511 = vmatpush.bf16.msra.mxu0 %v350
  %512 = vmatpush.bf16.msra.mxu0 %v349
  %513 = vmatmul.bf16.gmra.mxu0 %v473
  %v514 = vpop.f32.mrf.mxu0
  %v515 = vadd.f32 0.0, %v514
  %v516 = vpop.f32.mrf.mxu0
  %517 = vdwg.mxu0
  %v518 = vadd.f32 %v502, %v515
  %v519 = vtanh.pop %v518
  %v520 = vpack.c.bf16 %v519, %v519
  %s521 = scalar_lea.vmem [#allocation3], 12
  %522 = vst [vmem:[%s521] sm:$0xf] %v520
  %523 = vmatpush.bf16.msra.mxu0 %v227
  %524 = vmatpush.bf16.msra.mxu0 %v226
  %525 = vmatpush.bf16.msra.mxu0 %v225
  %526 = vmatpush.bf16.msra.mxu0 %v224
  %527 = vmatpush.bf16.msra.mxu0 %v223
  %528 = vmatpush.bf16.msra.mxu0 %v222
  %529 = vmatpush.bf16.msra.mxu0 %v221
  %530 = vmatpush.bf16.msra.mxu0 %v220
  %531 = vmatmul.bf16.gmra.mxu0 %v491
  %v532 = vpop.f32.mrf.mxu0
  %v533 = vadd.f32 0.0, %v532
  %v534 = vpop.f32.mrf.mxu0
  %535 = vdwg.mxu0
  %v536 = vadd.f32 %v175, %v533
  %v537 = vtanh.pop %v536
  %v538 = vpack.c.bf16 %v537, %v537
  %539 = vmatpush.bf16.msra.mxu0 %v294
  %540 = vmatpush.bf16.msra.mxu0 %v293
  %541 = vmatpush.bf16.msra.mxu0 %v292
  %542 = vmatpush.bf16.msra.mxu0 %v291
  %543 = vmatpush.bf16.msra.mxu0 %v290
  %544 = vmatpush.bf16.msra.mxu0 %v289
  %545 = vmatpush.bf16.msra.mxu0 %v288
  %546 = vmatpush.bf16.msra.mxu0 %v287
  %547 = vmatmul.bf16.gmra.mxu0 %v538
  %v548 = vpop.f32.mrf.mxu0
  %v549 = vadd.f32 %v253, %v548
  %v550 = vpop.f32.mrf.mxu0
  %551 = vdwg.mxu0
  %552 = vmatpush.bf16.msra.mxu0 %v356
  %553 = vmatpush.bf16.msra.mxu0 %v355
  %554 = vmatpush.bf16.msra.mxu0 %v354
  %555 = vmatpush.bf16.msra.mxu0 %v353
  %556 = vmatpush.bf16.msra.mxu0 %v352
  %557 = vmatpush.bf16.msra.mxu0 %v351
  %558 = vmatpush.bf16.msra.mxu0 %v350
  %559 = vmatpush.bf16.msra.mxu0 %v349
  %560 = vmatmul.bf16.gmra.mxu0 %v520
  %v561 = vpop.f32.mrf.mxu0
  %v562 = vadd.f32 0.0, %v561
  %v563 = vpop.f32.mrf.mxu0
  %564 = vdwg.mxu0
  %v565 = vadd.f32 %v549, %v562
  %v566 = vtanh.pop %v565
  %v567 = vpack.c.bf16 %v566, %v566
  %s568 = scalar_lea.vmem [#allocation3], 16
  %569 = vst [vmem:[%s568] sm:$0xf] %v567
  %570 = vmatpush.bf16.msra.mxu0 %v227
  %571 = vmatpush.bf16.msra.mxu0 %v226
  %572 = vmatpush.bf16.msra.mxu0 %v225
  %573 = vmatpush.bf16.msra.mxu0 %v224
  %574 = vmatpush.bf16.msra.mxu0 %v223
  %575 = vmatpush.bf16.msra.mxu0 %v222
  %576 = vmatpush.bf16.msra.mxu0 %v221
  %577 = vmatpush.bf16.msra.mxu0 %v220
  %578 = vmatmul.bf16.gmra.mxu0 %v538
  %v579 = vpop.f32.mrf.mxu0
  %v580 = vadd.f32 0.0, %v579
  %v581 = vpop.f32.mrf.mxu0
  %582 = vdwg.mxu0
  %v583 = vadd.f32 %v177, %v580
  %v584 = vtanh.pop %v583
  %v585 = vpack.c.bf16 %v584, %v584
  %586 = vmatpush.bf16.msra.mxu0 %v294
  %587 = vmatpush.bf16.msra.mxu0 %v293
  %588 = vmatpush.bf16.msra.mxu0 %v292
  %589 = vmatpush.bf16.msra.mxu0 %v291
  %590 = vmatpush.bf16.msra.mxu0 %v290
  %591 = vmatpush.bf16.msra.mxu0 %v289
  %592 = vmatpush.bf16.msra.mxu0 %v288
  %593 = vmatpush.bf16.msra.mxu0 %v287
  %594 = vmatmul.bf16.gmra.mxu0 %v585
  %v595 = vpop.f32.mrf.mxu0
  %v596 = vadd.f32 %v253, %v595
  %v597 = vpop.f32.mrf.mxu0
  %598 = vdwg.mxu0
  %599 = vmatpush.bf16.msra.mxu0 %v356
  %600 = vmatpush.bf16.msra.mxu0 %v355
  %601 = vmatpush.bf16.msra.mxu0 %v354
  %602 = vmatpush.bf16.msra.mxu0 %v353
  %603 = vmatpush.bf16.msra.mxu0 %v352
  %604 = vmatpush.bf16.msra.mxu0 %v351
  %605 = vmatpush.bf16.msra.mxu0 %v350
  %606 = vmatpush.bf16.msra.mxu0 %v349
  %607 = vmatmul.bf16.gmra.mxu0 %v567
  %v608 = vpop.f32.mrf.mxu0
  %v609 = vadd.f32 0.0, %v608
  %v610 = vpop.f32.mrf.mxu0
  %611 = vdwg.mxu0
  %v612 = vadd.f32 %v596, %v609
  %v613 = vtanh.pop %v612
  %v614 = vpack.c.bf16 %v613, %v613
  %s615 = scalar_lea.vmem [#allocation3], 20
  %616 = vst [vmem:[%s615] sm:$0xf] %v614
  %617 = vmatpush.bf16.msra.mxu0 %v227
  %618 = vmatpush.bf16.msra.mxu0 %v226
  %619 = vmatpush.bf16.msra.mxu0 %v225
  %620 = vmatpush.bf16.msra.mxu0 %v224
  %621 = vmatpush.bf16.msra.mxu0 %v223
  %622 = vmatpush.bf16.msra.mxu0 %v222
  %623 = vmatpush.bf16.msra.mxu0 %v221
  %624 = vmatpush.bf16.msra.mxu0 %v220
  %625 = vmatmul.bf16.gmra.mxu0 %v585
  %v626 = vpop.f32.mrf.mxu0
  %v627 = vadd.f32 0.0, %v626
  %v628 = vpop.f32.mrf.mxu0
  %629 = vdwg.mxu0
  %v630 = vadd.f32 %v180, %v627
  %v631 = vtanh.pop %v630
  %v632 = vpack.c.bf16 %v631, %v631
  %633 = vmatpush.bf16.msra.mxu0 %v294
  %634 = vmatpush.bf16.msra.mxu0 %v293
  %635 = vmatpush.bf16.msra.mxu0 %v292
  %636 = vmatpush.bf16.msra.mxu0 %v291
  %637 = vmatpush.bf16.msra.mxu0 %v290
  %638 = vmatpush.bf16.msra.mxu0 %v289
  %639 = vmatpush.bf16.msra.mxu0 %v288
  %640 = vmatpush.bf16.msra.mxu0 %v287
  %641 = vmatmul.bf16.gmra.mxu0 %v632
  %v642 = vpop.f32.mrf.mxu0
  %v643 = vadd.f32 %v253, %v642
  %v644 = vpop.f32.mrf.mxu0
  %645 = vdwg.mxu0
  %646 = vmatpush.bf16.msra.mxu0 %v356
  %647 = vmatpush.bf16.msra.mxu0 %v355
  %648 = vmatpush.bf16.msra.mxu0 %v354
  %649 = vmatpush.bf16.msra.mxu0 %v353
  %650 = vmatpush.bf16.msra.mxu0 %v352
  %651 = vmatpush.bf16.msra.mxu0 %v351
  %652 = vmatpush.bf16.msra.mxu0 %v350
  %653 = vmatpush.bf16.msra.mxu0 %v349
  %654 = vmatmul.bf16.gmra.mxu0 %v614
  %v655 = vpop.f32.mrf.mxu0
  %v656 = vadd.f32 0.0, %v655
  %v657 = vpop.f32.mrf.mxu0
  %658 = vdwg.mxu0
  %v659 = vadd.f32 %v643, %v656
  %v660 = vtanh.pop %v659
  %v661 = vpack.c.bf16 %v660, %v660
  %s662 = scalar_lea.vmem [#allocation3], 24
  %663 = vst [vmem:[%s662] sm:$0xf] %v661
  %664 = vmatpush.bf16.msra.mxu0 %v227
  %665 = vmatpush.bf16.msra.mxu0 %v226
  %666 = vmatpush.bf16.msra.mxu0 %v225
  %667 = vmatpush.bf16.msra.mxu0 %v224
  %668 = vmatpush.bf16.msra.mxu0 %v223
  %669 = vmatpush.bf16.msra.mxu0 %v222
  %670 = vmatpush.bf16.msra.mxu0 %v221
  %671 = vmatpush.bf16.msra.mxu0 %v220
  %672 = vmatmul.bf16.gmra.mxu0 %v632
  %v673 = vpop.f32.mrf.mxu0
  %v674 = vadd.f32 0.0, %v673
  %v675 = vpop.f32.mrf.mxu0
  %676 = vdwg.mxu0
  %v677 = vadd.f32 %v182, %v674
  %v678 = vtanh.pop %v677
  %v679 = vpack.c.bf16 %v678, %v678
  %680 = vmatpush.bf16.msra.mxu0 %v294
  %681 = vmatpush.bf16.msra.mxu0 %v293
  %682 = vmatpush.bf16.msra.mxu0 %v292
  %683 = vmatpush.bf16.msra.mxu0 %v291
  %684 = vmatpush.bf16.msra.mxu0 %v290
  %685 = vmatpush.bf16.msra.mxu0 %v289
  %686 = vmatpush.bf16.msra.mxu0 %v288
  %687 = vmatpush.bf16.msra.mxu0 %v287
  %688 = vmatmul.bf16.gmra.mxu0 %v679
  %v689 = vpop.f32.mrf.mxu0
  %v690 = vadd.f32 %v253, %v689
  %v691 = vpop.f32.mrf.mxu0
  %692 = vdwg.mxu0
  %693 = vmatpush.bf16.msra.mxu0 %v356
  %694 = vmatpush.bf16.msra.mxu0 %v355
  %695 = vmatpush.bf16.msra.mxu0 %v354
  %696 = vmatpush.bf16.msra.mxu0 %v353
  %697 = vmatpush.bf16.msra.mxu0 %v352
  %698 = vmatpush.bf16.msra.mxu0 %v351
  %699 = vmatpush.bf16.msra.mxu0 %v350
  %700 = vmatpush.bf16.msra.mxu0 %v349
  %701 = vmatmul.bf16.gmra.mxu0 %v661
  %v702 = vpop.f32.mrf.mxu0
  %v703 = vadd.f32 0.0, %v702
  %v704 = vpop.f32.mrf.mxu0
  %705 = vdwg.mxu0
  %v706 = vadd.f32 %v690, %v703
  %v707 = vtanh.pop %v706
  %v708 = vpack.c.bf16 %v707, %v707
  %s709 = scalar_lea.vmem [#allocation3], 28
  %710 = vst [vmem:[%s709] sm:$0xf] %v708
  %711 = vst [vmem:[#allocation2] sm:$0xff] %v678
  %712 = vst [vmem:[%s185] sm:$0xff] %v707
  %v713 = vld [vmem:[#allocation3] sm:$0xf]
  %v714 = vld [vmem:[#allocation3 + $0x4] sm:$0xf]
  %v715 = vld [vmem:[#allocation3 + $0x8] sm:$0xf]
  %v716 = vld [vmem:[#allocation3 + $0xc] sm:$0xf]
  %v717 = vld [vmem:[#allocation3 + $0x10] sm:$0xf]
  %v718 = vld [vmem:[#allocation3 + $0x14] sm:$0xf]
  %v719 = vld [vmem:[#allocation3 + $0x18] sm:$0xf]
  %v720 = vld [vmem:[#allocation3 + $0x1c] sm:$0xf]
  %v721 = vld [vmem:[%s7] sm:$0xf]
  %v722 = vld [vmem:[%s7 + $0x4] sm:$0xf]
  %v723 = vld [vmem:[%s7 + $0x8] sm:$0xf]
  %v724 = vld [vmem:[%s7 + $0xc] sm:$0xf]
  %v725 = vld [vmem:[%s7 + $0x10] sm:$0xf]
  %v726 = vld [vmem:[%s7 + $0x14] sm:$0xf]
  %v727 = vld [vmem:[%s7 + $0x18] sm:$0xf]
  %v728 = vld [vmem:[%s7 + $0x1c] sm:$0xf]
  %v729 = vld [vmem:[%s7 + $0x20] sm:$0xf]
  %v730 = vld [vmem:[%s7 + $0x24] sm:$0xf]
  %v731 = vld [vmem:[%s7 + $0x28] sm:$0xf]
  %v732 = vld [vmem:[%s7 + $0x2c] sm:$0xf]
  %v733 = vld [vmem:[%s7 + $0x30] sm:$0xf]
  %v734 = vld [vmem:[%s7 + $0x34] sm:$0xf]
  %v735 = vld [vmem:[%s7 + $0x38] sm:$0xf]
  %v736 = vld [vmem:[%s7 + $0x3c] sm:$0xf]
  %v737 = vld [vmem:[%s8] sm:$0x1]
  %v739 = vperm.slane %v737, 0
  %v749 = vunpack.c.l.b16 %v713
  %v750 = vunpack.c.l.b16 %v714
  %v751 = vunpack.c.l.b16 %v715
  %v752 = vunpack.c.l.b16 %v716
  %v753 = vunpack.c.l.b16 %v717
  %v754 = vunpack.c.l.b16 %v718
  %v755 = vunpack.c.l.b16 %v719
  %v756 = vunpack.c.l.b16 %v720
  %v757 = vpack.c.b16 %v750, %v749
  %v758 = vpack.c.b16 %v752, %v751
  %v759 = vpack.c.b16 %v754, %v753
  %v760 = vpack.c.b16 %v756, %v755
  %v781 = vunpack.c.l.b16 %v721
  %v782 = vunpack.c.l.b16 %v722
  %v783 = vunpack.c.l.b16 %v723
  %v784 = vunpack.c.l.b16 %v724
  %v785 = vunpack.c.l.b16 %v725
  %v786 = vunpack.c.l.b16 %v726
  %v787 = vunpack.c.l.b16 %v727
  %v788 = vunpack.c.l.b16 %v728
  %v789 = vunpack.c.l.b16 %v729
  %v790 = vunpack.c.l.b16 %v730
  %v791 = vunpack.c.l.b16 %v731
  %v792 = vunpack.c.l.b16 %v732
  %v793 = vunpack.c.l.b16 %v733
  %v794 = vunpack.c.l.b16 %v734
  %v795 = vunpack.c.l.b16 %v735
  %v796 = vunpack.c.l.b16 %v736
  %v797 = vpack.c.b16 %v782, %v781
  %v798 = vpack.c.b16 %v784, %v783
  %v799 = vpack.c.b16 %v786, %v785
  %v800 = vpack.c.b16 %v788, %v787
  %v801 = vpack.c.b16 %v790, %v789
  %v802 = vpack.c.b16 %v792, %v791
  %v803 = vpack.c.b16 %v794, %v793
  %v804 = vpack.c.b16 %v796, %v795
  %813 = vmatpush.bf16.msra.mxu0 %v804
  %814 = vmatpush.bf16.msra.mxu0 %v803
  %815 = vmatpush.bf16.msra.mxu0 %v802
  %816 = vmatpush.bf16.msra.mxu0 %v801
  %817 = vmatpush.bf16.msra.mxu0 %v800
  %818 = vmatpush.bf16.msra.mxu0 %v799
  %819 = vmatpush.bf16.msra.mxu0 %v798
  %820 = vmatpush.bf16.msra.mxu0 %v797
  %821 = vmatmul.bf16.gmra.mxu0 %v757
  %v822 = vpop.f32.mrf.mxu0
  %v823 = vadd.f32 %v739, %v822
  %v824 = vpop.f32.mrf.mxu0
  %v825 = vadd.f32 %v739, %v824
  %826 = vmatmul.bf16.gmra.mxu0 %v758
  %v827 = vpop.f32.mrf.mxu0
  %v828 = vadd.f32 %v739, %v827
  %v829 = vpop.f32.mrf.mxu0
  %v830 = vadd.f32 %v739, %v829
  %831 = vmatmul.bf16.gmra.mxu0 %v759
  %v832 = vpop.f32.mrf.mxu0
  %v833 = vadd.f32 %v739, %v832
  %v834 = vpop.f32.mrf.mxu0
  %v835 = vadd.f32 %v739, %v834
  %836 = vmatmul.bf16.gmra.mxu0 %v760
  %v837 = vpop.f32.mrf.mxu0
  %v838 = vadd.f32 %v739, %v837
  %v839 = vpop.f32.mrf.mxu0
  %v840 = vadd.f32 %v739, %v839
  %841 = vdwg.mxu0
  %v842 = vmax.f32 %v823, 0.0
  %v843 = vmax.f32 %v825, 0.0
  %v844 = vmax.f32 %v828, 0.0
  %v845 = vmax.f32 %v830, 0.0
  %v846 = vmax.f32 %v833, 0.0
  %v847 = vmax.f32 %v835, 0.0
  %v848 = vmax.f32 %v838, 0.0
  %v849 = vmax.f32 %v840, 0.0
  %v850 = vpack.c.bf16 %v843, %v842
  %v851 = vpack.c.bf16 %v845, %v844
  %v852 = vpack.c.bf16 %v847, %v846
  %v853 = vpack.c.bf16 %v849, %v848
  %v854 = vld [vmem:[%s9] sm:$0xf]
  %v855 = vld [vmem:[%s9 + $0x4] sm:$0xf]
  %v856 = vld [vmem:[%s9 + $0x8] sm:$0xf]
  %v857 = vld [vmem:[%s9 + $0xc] sm:$0xf]
  %v858 = vld [vmem:[%s9 + $0x10] sm:$0xf]
  %v859 = vld [vmem:[%s9 + $0x14] sm:$0xf]
  %v860 = vld [vmem:[%s9 + $0x18] sm:$0xf]
  %v861 = vld [vmem:[%s9 + $0x1c] sm:$0xf]
  %v862 = vld [vmem:[%s9 + $0x20] sm:$0xf]
  %v863 = vld [vmem:[%s9 + $0x24] sm:$0xf]
  %v864 = vld [vmem:[%s9 + $0x28] sm:$0xf]
  %v865 = vld [vmem:[%s9 + $0x2c] sm:$0xf]
  %v866 = vld [vmem:[%s9 + $0x30] sm:$0xf]
  %v867 = vld [vmem:[%s9 + $0x34] sm:$0xf]
  %v868 = vld [vmem:[%s9 + $0x38] sm:$0xf]
  %v869 = vld [vmem:[%s9 + $0x3c] sm:$0xf]
  %v870 = vld [vmem:[%s10] sm:$0x1]
  %v872 = vperm.slane %v870, 0
  %v890 = vunpack.c.l.b16 %v854
  %v891 = vunpack.c.l.b16 %v855
  %v892 = vunpack.c.l.b16 %v856
  %v893 = vunpack.c.l.b16 %v857
  %v894 = vunpack.c.l.b16 %v858
  %v895 = vunpack.c.l.b16 %v859
  %v896 = vunpack.c.l.b16 %v860
  %v897 = vunpack.c.l.b16 %v861
  %v898 = vunpack.c.l.b16 %v862
  %v899 = vunpack.c.l.b16 %v863
  %v900 = vunpack.c.l.b16 %v864
  %v901 = vunpack.c.l.b16 %v865
  %v902 = vunpack.c.l.b16 %v866
  %v903 = vunpack.c.l.b16 %v867
  %v904 = vunpack.c.l.b16 %v868
  %v905 = vunpack.c.l.b16 %v869
  %v906 = vpack.c.b16 %v891, %v890
  %v907 = vpack.c.b16 %v893, %v892
  %v908 = vpack.c.b16 %v895, %v894
  %v909 = vpack.c.b16 %v897, %v896
  %v910 = vpack.c.b16 %v899, %v898
  %v911 = vpack.c.b16 %v901, %v900
  %v912 = vpack.c.b16 %v903, %v902
  %v913 = vpack.c.b16 %v905, %v904
  %922 = vmatpush.bf16.msra.mxu0 %v913
  %923 = vmatpush.bf16.msra.mxu0 %v912
  %924 = vmatpush.bf16.msra.mxu0 %v911
  %925 = vmatpush.bf16.msra.mxu0 %v910
  %926 = vmatpush.bf16.msra.mxu0 %v909
  %927 = vmatpush.bf16.msra.mxu0 %v908
  %928 = vmatpush.bf16.msra.mxu0 %v907
  %929 = vmatpush.bf16.msra.mxu0 %v906
  %930 = vmatmul.bf16.gmra.mxu0 %v850
  %v931 = vpop.f32.mrf.mxu0
  %v932 = vadd.f32 %v872, %v931
  %v933 = vpop.f32.mrf.mxu0
  %v934 = vadd.f32 %v872, %v933
  %935 = vmatmul.bf16.gmra.mxu0 %v851
  %v936 = vpop.f32.mrf.mxu0
  %v937 = vadd.f32 %v872, %v936
  %v938 = vpop.f32.mrf.mxu0
  %v939 = vadd.f32 %v872, %v938
  %940 = vmatmul.bf16.gmra.mxu0 %v852
  %v941 = vpop.f32.mrf.mxu0
  %v942 = vadd.f32 %v872, %v941
  %v943 = vpop.f32.mrf.mxu0
  %v944 = vadd.f32 %v872, %v943
  %945 = vmatmul.bf16.gmra.mxu0 %v853
  %v946 = vpop.f32.mrf.mxu0
  %v947 = vadd.f32 %v872, %v946
  %v948 = vpop.f32.mrf.mxu0
  %v949 = vadd.f32 %v872, %v948
  %950 = vdwg.mxu0
  %951 = vst [vmem:[%s11] sm:$0xff] %v932
  %952 = vst [vmem:[%s11 + $0x8] sm:$0xff] %v934
  %953 = vst [vmem:[%s11 + $0x10] sm:$0xff] %v937
  %954 = vst [vmem:[%s11 + $0x18] sm:$0xff] %v939
  %955 = vst [vmem:[%s11 + $0x20] sm:$0xff] %v942
  %956 = vst [vmem:[%s11 + $0x28] sm:$0xff] %v944
  %957 = vst [vmem:[%s11 + $0x30] sm:$0xff] %v947
  %958 = vst [vmem:[%s11 + $0x38] sm:$0xff] %v949
  // Predicated region
  $region50: #{rnn_model_forward.1} parent=0 // pred_check
    _
  $region51: #{rnn_model_forward.1} parent=0 // pred_check_branch
    %960 = sbr.rel (0) target = $region53
  $region52: #{rnn_model_forward.1} parent=0 // pred_region
    _
  $region53: #{rnn_model_forward.1} parent=0 // pred_fallthru
    _
  // Predicated region
  $region54: #{rnn_model_forward.1} parent=0 // pred_check
    _
  $region55: #{rnn_model_forward.1} parent=0 // pred_check_branch
    %962 = sbr.rel (0) target = $region57
  $region56: #{rnn_model_forward.1} parent=0 // pred_region
    _
  $region57: #{rnn_model_forward.1} parent=0 // pred_fallthru
    _

</llo_original>
